<compile_context>
chip_gen: v5e
topology: v5e:2x2
jax: 0.10.0
libtpu: 0.0.40
codegen_flags: <defaults>
</compile_context>

<pallas_src>
import functools

import jax
import jax.numpy as jnp
from jax.experimental import pallas as pl
from jax.experimental.pallas import tpu as pltpu


def _round_up(x, m):
    return ((x + m - 1) // m) * m


# ----------------------------------------------------------------------------
# Fused kernel: all LSTM layers + FC head, one invocation (no grid).
# ----------------------------------------------------------------------------
def _fused_proposal_kernel(x_ref, len_ref, *refs, num_layers, T, Bp, H):
    """Refs layout (after x_ref, len_ref):
         w_ih_0, w_hh_0, bias_0, ..., w_ih_{L-1}, w_hh_{L-1}, bias_{L-1},
         w_fc, b_fc,                      # remaining inputs
         out_ref,                         # output (T*Bp, A_pad)
         xproj_scr, hbuf_scr              # VMEM scratch
    """
    layer_refs = refs[:3 * num_layers]
    w_fc_ref = refs[3 * num_layers]
    b_fc_ref = refs[3 * num_layers + 1]
    out_ref = refs[3 * num_layers + 2]
    xproj_scr = refs[3 * num_layers + 3]   # (T*Bp, 4H)
    hbuf_scr = refs[3 * num_layers + 4]    # (T*Bp, H)

    len_col = len_ref[...]                 # (Bp, 1) int32

    for layer in range(num_layers):
        w_ih = layer_refs[3 * layer][...]      # (Din, 4H)
        w_hh = layer_refs[3 * layer + 1][...]  # (H, 4H)
        bias = layer_refs[3 * layer + 2][...]  # (1, 4H)

        # ---- Input projection hoisted out of the recurrence: one big matmul
        # over all timesteps, plus the bias add (bias folded in here so the
        # serial loop below only does h @ W_hh + pre).
        xin = x_ref[...] if layer == 0 else hbuf_scr[...]   # (T*Bp, Din)
        xproj_scr[...] = (
            jnp.dot(xin, w_ih, preferred_element_type=jnp.float32) + bias)

        # ---- Serial recurrence over time (statically unrolled; T is small).
        h = jnp.zeros((Bp, H), jnp.float32)
        c = jnp.zeros((Bp, H), jnp.float32)
        for t in range(T):
            pre = xproj_scr[pl.ds(t * Bp, Bp), :]            # (Bp, 4H) view
            gates = pre + jnp.dot(h, w_hh,
                                  preferred_element_type=jnp.float32)
            f = gates[:, 0 * H:1 * H]
            i = gates[:, 1 * H:2 * H]
            o = gates[:, 2 * H:3 * H]
            g = gates[:, 3 * H:4 * H]
            c1 = jax.nn.sigmoid(f) * c + jax.nn.sigmoid(i) * jnp.tanh(g)
            h1 = jax.nn.sigmoid(o) * jnp.tanh(c1)
            keep = t < len_col                               # (Bp, 1) bool
            h = jnp.where(keep, h1, h)
            c = jnp.where(keep, c1, c)
            hbuf_scr[pl.ds(t * Bp, Bp), :] = h

    # ---- FC head: one lane-dense matmul over all timesteps.
    out_ref[...] = (
        jnp.dot(hbuf_scr[...], w_fc_ref[...],
                preferred_element_type=jnp.float32) + b_fc_ref[...])


# ----------------------------------------------------------------------------
# Wrapper: padding / layout plumbing + the single pallas_call.
# ----------------------------------------------------------------------------
@jax.jit
def proposal_model_forward(params, x, length):
    """x: (T, B, D) f32, length: (B,) int -> (T, B, A) f32."""
    T, B, D = x.shape
    H = params["layers"][0][1].shape[0]
    A = params["w_fc"].shape[1]
    L = len(params["layers"])

    Bp = _round_up(B, 8)        # sublane-aligned batch
    Ap = _round_up(A, 128)      # lane-dense FC output

    # Pad batch (padded rows get length 0 -> frozen at zero state).
    x_p = jnp.zeros((T, Bp, D), jnp.float32).at[:, :B, :].set(x)
    x2d = x_p.reshape(T * Bp, D)
    len_p = jnp.zeros((Bp, 1), jnp.int32).at[:B, 0].set(length.astype(jnp.int32))

    # Pad FC weights along the anchor (lane) dimension.
    w_fc_p = jnp.zeros((H, Ap), jnp.float32).at[:, :A].set(params["w_fc"])
    b_fc_p = jnp.zeros((1, Ap), jnp.float32).at[0, :A].set(params["b_fc"])

    inputs = [x2d, len_p]
    for (w_ih, w_hh, bias) in params["layers"]:
        inputs += [w_ih, w_hh, bias.reshape(1, -1)]
    inputs += [w_fc_p, b_fc_p]

    kernel = functools.partial(
        _fused_proposal_kernel, num_layers=L, T=T, Bp=Bp, H=H)

    out2d = pl.pallas_call(
        kernel,
        out_shape=jax.ShapeDtypeStruct((T * Bp, Ap), jnp.float32),
        in_specs=[pl.BlockSpec(memory_space=pltpu.MemorySpace.VMEM)
                  for _ in inputs],
        out_specs=pl.BlockSpec(memory_space=pltpu.MemorySpace.VMEM),
        scratch_shapes=[
            pltpu.VMEM((T * Bp, 4 * H), jnp.float32),   # hoisted x @ W_ih
            pltpu.VMEM((T * Bp, H), jnp.float32),       # current layer outputs
        ],
    )(*inputs)

    return out2d.reshape(T, Bp, Ap)[:, :B, :A]


# ----------------------------------------------------------------------------
# Pure-JAX reference (for correctness check).
# ----------------------------------------------------------------------------
def reference_forward(params, x, length):
    T, B, _ = x.shape
    length = length.astype(jnp.int32)

    def run_layer(inp, w_ih, w_hh, bias):
        H = w_hh.shape[0]

        def step(carry, xt_t):
            xt, t = xt_t
            h0, c0 = carry
            gates = h0 @ w_hh + xt @ w_ih + bias[None, :]
            f, i, o, g = jnp.split(gates, 4, axis=1)
            c1 = jax.nn.sigmoid(f) * c0 + jax.nn.sigmoid(i) * jnp.tanh(g)
            h1 = jax.nn.sigmoid(o) * jnp.tanh(c1)
            mask = (t < length).astype(jnp.float32)[:, None]
            h_new = h1 * mask + h0 * (1.0 - mask)
            c_new = c1 * mask + c0 * (1.0 - mask)
            return (h_new, c_new), h_new

        init = (jnp.zeros((B, H), jnp.float32), jnp.zeros((B, H), jnp.float32))
        _, out = jax.lax.scan(step, init, (inp, jnp.arange(T, dtype=jnp.int32)))
        return out

    h = x
    for (w_ih, w_hh, bias) in params["layers"]:
        h = run_layer(h, w_ih, w_hh, bias)
    return h @ params["w_fc"] + params["b_fc"][None, None, :]


# ----------------------------------------------------------------------------
# Deterministic parameter init (mirrors ProposalModel._init).
# ----------------------------------------------------------------------------
def init_params(key, options):
    D = options["video_feat_dim"]
    H = options["rnn_size"]
    L = options["num_rnn_layers"]
    A = options["num_anchors"]
    s = options["init_scale"]

    layers = []
    for layer in range(L):
        in_dim = D if layer == 0 else H
        key, k1, k2 = jax.random.split(key, 3)
        w_ih = jax.random.uniform(k1, (in_dim, 4 * H), jnp.float32, -s, s)
        w_hh = jax.random.uniform(k2, (H, 4 * H), jnp.float32, -s, s)
        bias = jnp.zeros((4 * H,), jnp.float32)
        layers.append((w_ih, w_hh, bias))

    key, kf = jax.random.split(key)
    w_fc = jax.random.uniform(kf, (H, A), jnp.float32, -s, s)
    b_fc = jnp.zeros((A,), jnp.float32)
    return {"layers": layers, "w_fc": w_fc, "b_fc": b_fc}


if __name__ == "__main__":
    options = {
        "rnn_type": "lstm",
        "video_feat_dim": 32,
        "rnn_size": 32,
        "num_rnn_layers": 2,
        "num_anchors": 16,
        "rnn_drop": 0.0,
        "init_scale": 0.08,
    }
    T, B = 8, 4

    key = jax.random.PRNGKey(0)
    key, kx = jax.random.split(key)
    params = init_params(key, options)

    x = jax.random.normal(kx, (T, B, options["video_feat_dim"]), jnp.float32)
    length = jnp.array([8, 5, 3, 8], dtype=jnp.int32)  # per-batch valid lengths

    out = proposal_model_forward(params, x, length)
    out = jax.block_until_ready(out)

    ref = reference_forward(params, x, length)
    assert out.shape == (T, B, options["num_anchors"])
    assert jnp.allclose(out, ref, atol=2e-3, rtol=2e-3), "mismatch vs reference"

    print("KERNEL_OK")
</pallas_src>

<mosaic_0001>
module attributes {stable_mosaic.version = 11 : i64} {
  func.func @_fused_proposal_kernel(%arg0: memref<64x32xf32, #tpu.memory_space<vmem>>, %arg1: memref<8x1xi32, #tpu.memory_space<vmem>>, %arg2: memref<32x128xf32, #tpu.memory_space<vmem>>, %arg3: memref<32x128xf32, #tpu.memory_space<vmem>>, %arg4: memref<1x128xf32, #tpu.memory_space<vmem>>, %arg5: memref<32x128xf32, #tpu.memory_space<vmem>>, %arg6: memref<32x128xf32, #tpu.memory_space<vmem>>, %arg7: memref<1x128xf32, #tpu.memory_space<vmem>>, %arg8: memref<32x128xf32, #tpu.memory_space<vmem>>, %arg9: memref<1x128xf32, #tpu.memory_space<vmem>>, %arg10: memref<64x128xf32, #tpu.memory_space<vmem>>, %arg11: memref<64x128xf32, #tpu.memory_space<vmem>>, %arg12: memref<64x32xf32, #tpu.memory_space<vmem>>) attributes {dimension_semantics = [], scalar_prefetch = 0 : i64, scratch_operands = 2 : i64, tpu.core_type = #tpu.core_type<tc>} {
    %c0 = arith.constant 0 : index
    %c0_0 = arith.constant 0 : index
    %0 = vector.load %arg1[%c0, %c0_0] : memref<8x1xi32, #tpu.memory_space<vmem>>, vector<8x1xi32>
    %c0_1 = arith.constant 0 : index
    %c0_2 = arith.constant 0 : index
    %1 = vector.load %arg2[%c0_1, %c0_2] : memref<32x128xf32, #tpu.memory_space<vmem>>, vector<32x128xf32>
    %c0_3 = arith.constant 0 : index
    %c0_4 = arith.constant 0 : index
    %2 = vector.load %arg3[%c0_3, %c0_4] : memref<32x128xf32, #tpu.memory_space<vmem>>, vector<32x128xf32>
    %c0_5 = arith.constant 0 : index
    %c0_6 = arith.constant 0 : index
    %3 = vector.load %arg4[%c0_5, %c0_6] : memref<1x128xf32, #tpu.memory_space<vmem>>, vector<1x128xf32>
    %c0_7 = arith.constant 0 : index
    %c0_8 = arith.constant 0 : index
    %4 = vector.load %arg0[%c0_7, %c0_8] : memref<64x32xf32, #tpu.memory_space<vmem>>, vector<64x32xf32>
    %cst = arith.constant dense<0.000000e+00> : vector<64x128xf32>
    %5 = tpu.matmul %4, %1, %cst {dimension_numbers = #tpu.dot_dimension_numbers<[1], [0], [0], [1], [0, 0, 1, 1], [], []>} : vector<64x32xf32>, vector<32x128xf32>, vector<64x128xf32> -> vector<64x128xf32>
    %6 = vector.broadcast %3 : vector<1x128xf32> to vector<64x128xf32>
    %7 = arith.addf %5, %6 : vector<64x128xf32>
    %c0_9 = arith.constant 0 : index
    %c0_10 = arith.constant 0 : index
    %8 = vector.load %arg11[%c0_9, %c0_10] : memref<64x128xf32, #tpu.memory_space<vmem>>, vector<64x128xf32>
    tpu.vector_store %arg11[%c0_9, %c0_10], %7 {strides = array<i32>} : memref<64x128xf32, #tpu.memory_space<vmem>>, vector<64x128xf32>,
    %cst_11 = arith.constant 0.000000e+00 : f32
    %9 = vector.broadcast %cst_11 : f32 to vector<8x32xf32>
    %cst_12 = arith.constant 0.000000e+00 : f32
    %10 = vector.broadcast %cst_12 : f32 to vector<8x32xf32>
    %c0_13 = arith.constant 0 : index
    %c0_14 = arith.constant 0 : index
    %11 = vector.load %arg11[%c0_13, %c0_14] : memref<64x128xf32, #tpu.memory_space<vmem>>, vector<8x128xf32>
    %cst_15 = arith.constant dense<0.000000e+00> : vector<8x128xf32>
    %12 = tpu.matmul %9, %2, %cst_15 {dimension_numbers = #tpu.dot_dimension_numbers<[1], [0], [0], [1], [0, 0, 1, 1], [], []>} : vector<8x32xf32>, vector<32x128xf32>, vector<8x128xf32> -> vector<8x128xf32>
    %13 = arith.addf %11, %12 : vector<8x128xf32>
    %14 = vector.extract_strided_slice %13 {offsets = [0, 0], sizes = [8, 32], strides = [1, 1]} : vector<8x128xf32> to vector<8x32xf32>
    %15 = vector.extract_strided_slice %13 {offsets = [0, 32], sizes = [8, 32], strides = [1, 1]} : vector<8x128xf32> to vector<8x32xf32>
    %16 = vector.extract_strided_slice %13 {offsets = [0, 64], sizes = [8, 32], strides = [1, 1]} : vector<8x128xf32> to vector<8x32xf32>
    %17 = vector.extract_strided_slice %13 {offsets = [0, 96], sizes = [8, 32], strides = [1, 1]} : vector<8x128xf32> to vector<8x32xf32>
    %18 = arith.negf %14 : vector<8x32xf32>
    %19 = math.exp %18 : vector<8x32xf32>
    %cst_16 = arith.constant 1.000000e+00 : f32
    %20 = vector.broadcast %cst_16 : f32 to vector<8x32xf32>
    %21 = arith.addf %20, %19 : vector<8x32xf32>
    %22 = arith.divf %20, %21 : vector<8x32xf32>
    %23 = arith.mulf %22, %10 : vector<8x32xf32>
    %24 = arith.negf %15 : vector<8x32xf32>
    %25 = math.exp %24 : vector<8x32xf32>
    %cst_17 = arith.constant 1.000000e+00 : f32
    %26 = vector.broadcast %cst_17 : f32 to vector<8x32xf32>
    %27 = arith.addf %26, %25 : vector<8x32xf32>
    %28 = arith.divf %26, %27 : vector<8x32xf32>
    %29 = math.tanh %17 : vector<8x32xf32>
    %30 = arith.mulf %28, %29 : vector<8x32xf32>
    %31 = arith.addf %23, %30 : vector<8x32xf32>
    %32 = arith.negf %16 : vector<8x32xf32>
    %33 = math.exp %32 : vector<8x32xf32>
    %cst_18 = arith.constant 1.000000e+00 : f32
    %34 = vector.broadcast %cst_18 : f32 to vector<8x32xf32>
    %35 = arith.addf %34, %33 : vector<8x32xf32>
    %36 = arith.divf %34, %35 : vector<8x32xf32>
    %37 = math.tanh %31 : vector<8x32xf32>
    %38 = arith.mulf %36, %37 : vector<8x32xf32>
    %c0_i32 = arith.constant 0 : i32
    %39 = vector.broadcast %c0_i32 : i32 to vector<8x1xi32>
    %40 = arith.cmpi sgt, %0, %39 : vector<8x1xi32>
    %41 = vector.shape_cast %40 : vector<8x1xi1> to vector<8x1xi1>
    %42 = vector.broadcast %41 : vector<8x1xi1> to vector<8x32xi1>
    %43 = arith.select %42, %38, %9 : vector<8x32xi1>, vector<8x32xf32>
    %44 = vector.shape_cast %40 : vector<8x1xi1> to vector<8x1xi1>
    %45 = vector.broadcast %44 : vector<8x1xi1> to vector<8x32xi1>
    %46 = arith.select %45, %31, %10 : vector<8x32xi1>, vector<8x32xf32>
    %c0_19 = arith.constant 0 : index
    %c0_20 = arith.constant 0 : index
    %47 = vector.load %arg12[%c0_19, %c0_20] : memref<64x32xf32, #tpu.memory_space<vmem>>, vector<8x32xf32>
    tpu.vector_store %arg12[%c0_19, %c0_20], %43 {strides = array<i32>} : memref<64x32xf32, #tpu.memory_space<vmem>>, vector<8x32xf32>,
    %c8 = arith.constant 8 : index
    %c0_21 = arith.constant 0 : index
    %48 = vector.load %arg11[%c8, %c0_21] : memref<64x128xf32, #tpu.memory_space<vmem>>, vector<8x128xf32>
    %cst_22 = arith.constant dense<0.000000e+00> : vector<8x128xf32>
    %49 = tpu.matmul %43, %2, %cst_22 {dimension_numbers = #tpu.dot_dimension_numbers<[1], [0], [0], [1], [0, 0, 1, 1], [], []>} : vector<8x32xf32>, vector<32x128xf32>, vector<8x128xf32> -> vector<8x128xf32>
    %50 = arith.addf %48, %49 : vector<8x128xf32>
    %51 = vector.extract_strided_slice %50 {offsets = [0, 0], sizes = [8, 32], strides = [1, 1]} : vector<8x128xf32> to vector<8x32xf32>
    %52 = vector.extract_strided_slice %50 {offsets = [0, 32], sizes = [8, 32], strides = [1, 1]} : vector<8x128xf32> to vector<8x32xf32>
    %53 = vector.extract_strided_slice %50 {offsets = [0, 64], sizes = [8, 32], strides = [1, 1]} : vector<8x128xf32> to vector<8x32xf32>
    %54 = vector.extract_strided_slice %50 {offsets = [0, 96], sizes = [8, 32], strides = [1, 1]} : vector<8x128xf32> to vector<8x32xf32>
    %55 = arith.negf %51 : vector<8x32xf32>
    %56 = math.exp %55 : vector<8x32xf32>
    %cst_23 = arith.constant 1.000000e+00 : f32
    %57 = vector.broadcast %cst_23 : f32 to vector<8x32xf32>
    %58 = arith.addf %57, %56 : vector<8x32xf32>
    %59 = arith.divf %57, %58 : vector<8x32xf32>
    %60 = arith.mulf %59, %46 : vector<8x32xf32>
    %61 = arith.negf %52 : vector<8x32xf32>
    %62 = math.exp %61 : vector<8x32xf32>
    %cst_24 = arith.constant 1.000000e+00 : f32
    %63 = vector.broadcast %cst_24 : f32 to vector<8x32xf32>
    %64 = arith.addf %63, %62 : vector<8x32xf32>
    %65 = arith.divf %63, %64 : vector<8x32xf32>
    %66 = math.tanh %54 : vector<8x32xf32>
    %67 = arith.mulf %65, %66 : vector<8x32xf32>
    %68 = arith.addf %60, %67 : vector<8x32xf32>
    %69 = arith.negf %53 : vector<8x32xf32>
    %70 = math.exp %69 : vector<8x32xf32>
    %cst_25 = arith.constant 1.000000e+00 : f32
    %71 = vector.broadcast %cst_25 : f32 to vector<8x32xf32>
    %72 = arith.addf %71, %70 : vector<8x32xf32>
    %73 = arith.divf %71, %72 : vector<8x32xf32>
    %74 = math.tanh %68 : vector<8x32xf32>
    %75 = arith.mulf %73, %74 : vector<8x32xf32>
    %c1_i32 = arith.constant 1 : i32
    %76 = vector.broadcast %c1_i32 : i32 to vector<8x1xi32>
    %77 = arith.cmpi sgt, %0, %76 : vector<8x1xi32>
    %78 = vector.shape_cast %77 : vector<8x1xi1> to vector<8x1xi1>
    %79 = vector.broadcast %78 : vector<8x1xi1> to vector<8x32xi1>
    %80 = arith.select %79, %75, %43 : vector<8x32xi1>, vector<8x32xf32>
    %81 = vector.shape_cast %77 : vector<8x1xi1> to vector<8x1xi1>
    %82 = vector.broadcast %81 : vector<8x1xi1> to vector<8x32xi1>
    %83 = arith.select %82, %68, %46 : vector<8x32xi1>, vector<8x32xf32>
    %c8_26 = arith.constant 8 : index
    %c0_27 = arith.constant 0 : index
    %84 = vector.load %arg12[%c8_26, %c0_27] : memref<64x32xf32, #tpu.memory_space<vmem>>, vector<8x32xf32>
    tpu.vector_store %arg12[%c8_26, %c0_27], %80 {strides = array<i32>} : memref<64x32xf32, #tpu.memory_space<vmem>>, vector<8x32xf32>,
    %c16 = arith.constant 16 : index
    %c0_28 = arith.constant 0 : index
    %85 = vector.load %arg11[%c16, %c0_28] : memref<64x128xf32, #tpu.memory_space<vmem>>, vector<8x128xf32>
    %cst_29 = arith.constant dense<0.000000e+00> : vector<8x128xf32>
    %86 = tpu.matmul %80, %2, %cst_29 {dimension_numbers = #tpu.dot_dimension_numbers<[1], [0], [0], [1], [0, 0, 1, 1], [], []>} : vector<8x32xf32>, vector<32x128xf32>, vector<8x128xf32> -> vector<8x128xf32>
    %87 = arith.addf %85, %86 : vector<8x128xf32>
    %88 = vector.extract_strided_slice %87 {offsets = [0, 0], sizes = [8, 32], strides = [1, 1]} : vector<8x128xf32> to vector<8x32xf32>
    %89 = vector.extract_strided_slice %87 {offsets = [0, 32], sizes = [8, 32], strides = [1, 1]} : vector<8x128xf32> to vector<8x32xf32>
    %90 = vector.extract_strided_slice %87 {offsets = [0, 64], sizes = [8, 32], strides = [1, 1]} : vector<8x128xf32> to vector<8x32xf32>
    %91 = vector.extract_strided_slice %87 {offsets = [0, 96], sizes = [8, 32], strides = [1, 1]} : vector<8x128xf32> to vector<8x32xf32>
    %92 = arith.negf %88 : vector<8x32xf32>
    %93 = math.exp %92 : vector<8x32xf32>
    %cst_30 = arith.constant 1.000000e+00 : f32
    %94 = vector.broadcast %cst_30 : f32 to vector<8x32xf32>
    %95 = arith.addf %94, %93 : vector<8x32xf32>
    %96 = arith.divf %94, %95 : vector<8x32xf32>
    %97 = arith.mulf %96, %83 : vector<8x32xf32>
    %98 = arith.negf %89 : vector<8x32xf32>
    %99 = math.exp %98 : vector<8x32xf32>
    %cst_31 = arith.constant 1.000000e+00 : f32
    %100 = vector.broadcast %cst_31 : f32 to vector<8x32xf32>
    %101 = arith.addf %100, %99 : vector<8x32xf32>
    %102 = arith.divf %100, %101 : vector<8x32xf32>
    %103 = math.tanh %91 : vector<8x32xf32>
    %104 = arith.mulf %102, %103 : vector<8x32xf32>
    %105 = arith.addf %97, %104 : vector<8x32xf32>
    %106 = arith.negf %90 : vector<8x32xf32>
    %107 = math.exp %106 : vector<8x32xf32>
    %cst_32 = arith.constant 1.000000e+00 : f32
    %108 = vector.broadcast %cst_32 : f32 to vector<8x32xf32>
    %109 = arith.addf %108, %107 : vector<8x32xf32>
    %110 = arith.divf %108, %109 : vector<8x32xf32>
    %111 = math.tanh %105 : vector<8x32xf32>
    %112 = arith.mulf %110, %111 : vector<8x32xf32>
    %c2_i32 = arith.constant 2 : i32
    %113 = vector.broadcast %c2_i32 : i32 to vector<8x1xi32>
    %114 = arith.cmpi sgt, %0, %113 : vector<8x1xi32>
    %115 = vector.shape_cast %114 : vector<8x1xi1> to vector<8x1xi1>
    %116 = vector.broadcast %115 : vector<8x1xi1> to vector<8x32xi1>
    %117 = arith.select %116, %112, %80 : vector<8x32xi1>, vector<8x32xf32>
    %118 = vector.shape_cast %114 : vector<8x1xi1> to vector<8x1xi1>
    %119 = vector.broadcast %118 : vector<8x1xi1> to vector<8x32xi1>
    %120 = arith.select %119, %105, %83 : vector<8x32xi1>, vector<8x32xf32>
    %c16_33 = arith.constant 16 : index
    %c0_34 = arith.constant 0 : index
    %121 = vector.load %arg12[%c16_33, %c0_34] : memref<64x32xf32, #tpu.memory_space<vmem>>, vector<8x32xf32>
    tpu.vector_store %arg12[%c16_33, %c0_34], %117 {strides = array<i32>} : memref<64x32xf32, #tpu.memory_space<vmem>>, vector<8x32xf32>,
    %c24 = arith.constant 24 : index
    %c0_35 = arith.constant 0 : index
    %122 = vector.load %arg11[%c24, %c0_35] : memref<64x128xf32, #tpu.memory_space<vmem>>, vector<8x128xf32>
    %cst_36 = arith.constant dense<0.000000e+00> : vector<8x128xf32>
    %123 = tpu.matmul %117, %2, %cst_36 {dimension_numbers = #tpu.dot_dimension_numbers<[1], [0], [0], [1], [0, 0, 1, 1], [], []>} : vector<8x32xf32>, vector<32x128xf32>, vector<8x128xf32> -> vector<8x128xf32>
    %124 = arith.addf %122, %123 : vector<8x128xf32>
    %125 = vector.extract_strided_slice %124 {offsets = [0, 0], sizes = [8, 32], strides = [1, 1]} : vector<8x128xf32> to vector<8x32xf32>
    %126 = vector.extract_strided_slice %124 {offsets = [0, 32], sizes = [8, 32], strides = [1, 1]} : vector<8x128xf32> to vector<8x32xf32>
    %127 = vector.extract_strided_slice %124 {offsets = [0, 64], sizes = [8, 32], strides = [1, 1]} : vector<8x128xf32> to vector<8x32xf32>
    %128 = vector.extract_strided_slice %124 {offsets = [0, 96], sizes = [8, 32], strides = [1, 1]} : vector<8x128xf32> to vector<8x32xf32>
    %129 = arith.negf %125 : vector<8x32xf32>
    %130 = math.exp %129 : vector<8x32xf32>
    %cst_37 = arith.constant 1.000000e+00 : f32
    %131 = vector.broadcast %cst_37 : f32 to vector<8x32xf32>
    %132 = arith.addf %131, %130 : vector<8x32xf32>
    %133 = arith.divf %131, %132 : vector<8x32xf32>
    %134 = arith.mulf %133, %120 : vector<8x32xf32>
    %135 = arith.negf %126 : vector<8x32xf32>
    %136 = math.exp %135 : vector<8x32xf32>
    %cst_38 = arith.constant 1.000000e+00 : f32
    %137 = vector.broadcast %cst_38 : f32 to vector<8x32xf32>
    %138 = arith.addf %137, %136 : vector<8x32xf32>
    %139 = arith.divf %137, %138 : vector<8x32xf32>
    %140 = math.tanh %128 : vector<8x32xf32>
    %141 = arith.mulf %139, %140 : vector<8x32xf32>
    %142 = arith.addf %134, %141 : vector<8x32xf32>
    %143 = arith.negf %127 : vector<8x32xf32>
    %144 = math.exp %143 : vector<8x32xf32>
    %cst_39 = arith.constant 1.000000e+00 : f32
    %145 = vector.broadcast %cst_39 : f32 to vector<8x32xf32>
    %146 = arith.addf %145, %144 : vector<8x32xf32>
    %147 = arith.divf %145, %146 : vector<8x32xf32>
    %148 = math.tanh %142 : vector<8x32xf32>
    %149 = arith.mulf %147, %148 : vector<8x32xf32>
    %c3_i32 = arith.constant 3 : i32
    %150 = vector.broadcast %c3_i32 : i32 to vector<8x1xi32>
    %151 = arith.cmpi sgt, %0, %150 : vector<8x1xi32>
    %152 = vector.shape_cast %151 : vector<8x1xi1> to vector<8x1xi1>
    %153 = vector.broadcast %152 : vector<8x1xi1> to vector<8x32xi1>
    %154 = arith.select %153, %149, %117 : vector<8x32xi1>, vector<8x32xf32>
    %155 = vector.shape_cast %151 : vector<8x1xi1> to vector<8x1xi1>
    %156 = vector.broadcast %155 : vector<8x1xi1> to vector<8x32xi1>
    %157 = arith.select %156, %142, %120 : vector<8x32xi1>, vector<8x32xf32>
    %c24_40 = arith.constant 24 : index
    %c0_41 = arith.constant 0 : index
    %158 = vector.load %arg12[%c24_40, %c0_41] : memref<64x32xf32, #tpu.memory_space<vmem>>, vector<8x32xf32>
    tpu.vector_store %arg12[%c24_40, %c0_41], %154 {strides = array<i32>} : memref<64x32xf32, #tpu.memory_space<vmem>>, vector<8x32xf32>,
    %c32 = arith.constant 32 : index
    %c0_42 = arith.constant 0 : index
    %159 = vector.load %arg11[%c32, %c0_42] : memref<64x128xf32, #tpu.memory_space<vmem>>, vector<8x128xf32>
    %cst_43 = arith.constant dense<0.000000e+00> : vector<8x128xf32>
    %160 = tpu.matmul %154, %2, %cst_43 {dimension_numbers = #tpu.dot_dimension_numbers<[1], [0], [0], [1], [0, 0, 1, 1], [], []>} : vector<8x32xf32>, vector<32x128xf32>, vector<8x128xf32> -> vector<8x128xf32>
    %161 = arith.addf %159, %160 : vector<8x128xf32>
    %162 = vector.extract_strided_slice %161 {offsets = [0, 0], sizes = [8, 32], strides = [1, 1]} : vector<8x128xf32> to vector<8x32xf32>
    %163 = vector.extract_strided_slice %161 {offsets = [0, 32], sizes = [8, 32], strides = [1, 1]} : vector<8x128xf32> to vector<8x32xf32>
    %164 = vector.extract_strided_slice %161 {offsets = [0, 64], sizes = [8, 32], strides = [1, 1]} : vector<8x128xf32> to vector<8x32xf32>
    %165 = vector.extract_strided_slice %161 {offsets = [0, 96], sizes = [8, 32], strides = [1, 1]} : vector<8x128xf32> to vector<8x32xf32>
    %166 = arith.negf %162 : vector<8x32xf32>
    %167 = math.exp %166 : vector<8x32xf32>
    %cst_44 = arith.constant 1.000000e+00 : f32
    %168 = vector.broadcast %cst_44 : f32 to vector<8x32xf32>
    %169 = arith.addf %168, %167 : vector<8x32xf32>
    %170 = arith.divf %168, %169 : vector<8x32xf32>
    %171 = arith.mulf %170, %157 : vector<8x32xf32>
    %172 = arith.negf %163 : vector<8x32xf32>
    %173 = math.exp %172 : vector<8x32xf32>
    %cst_45 = arith.constant 1.000000e+00 : f32
    %174 = vector.broadcast %cst_45 : f32 to vector<8x32xf32>
    %175 = arith.addf %174, %173 : vector<8x32xf32>
    %176 = arith.divf %174, %175 : vector<8x32xf32>
    %177 = math.tanh %165 : vector<8x32xf32>
    %178 = arith.mulf %176, %177 : vector<8x32xf32>
    %179 = arith.addf %171, %178 : vector<8x32xf32>
    %180 = arith.negf %164 : vector<8x32xf32>
    %181 = math.exp %180 : vector<8x32xf32>
    %cst_46 = arith.constant 1.000000e+00 : f32
    %182 = vector.broadcast %cst_46 : f32 to vector<8x32xf32>
    %183 = arith.addf %182, %181 : vector<8x32xf32>
    %184 = arith.divf %182, %183 : vector<8x32xf32>
    %185 = math.tanh %179 : vector<8x32xf32>
    %186 = arith.mulf %184, %185 : vector<8x32xf32>
    %c4_i32 = arith.constant 4 : i32
    %187 = vector.broadcast %c4_i32 : i32 to vector<8x1xi32>
    %188 = arith.cmpi sgt, %0, %187 : vector<8x1xi32>
    %189 = vector.shape_cast %188 : vector<8x1xi1> to vector<8x1xi1>
    %190 = vector.broadcast %189 : vector<8x1xi1> to vector<8x32xi1>
    %191 = arith.select %190, %186, %154 : vector<8x32xi1>, vector<8x32xf32>
    %192 = vector.shape_cast %188 : vector<8x1xi1> to vector<8x1xi1>
    %193 = vector.broadcast %192 : vector<8x1xi1> to vector<8x32xi1>
    %194 = arith.select %193, %179, %157 : vector<8x32xi1>, vector<8x32xf32>
    %c32_47 = arith.constant 32 : index
    %c0_48 = arith.constant 0 : index
    %195 = vector.load %arg12[%c32_47, %c0_48] : memref<64x32xf32, #tpu.memory_space<vmem>>, vector<8x32xf32>
    tpu.vector_store %arg12[%c32_47, %c0_48], %191 {strides = array<i32>} : memref<64x32xf32, #tpu.memory_space<vmem>>, vector<8x32xf32>,
    %c40 = arith.constant 40 : index
    %c0_49 = arith.constant 0 : index
    %196 = vector.load %arg11[%c40, %c0_49] : memref<64x128xf32, #tpu.memory_space<vmem>>, vector<8x128xf32>
    %cst_50 = arith.constant dense<0.000000e+00> : vector<8x128xf32>
    %197 = tpu.matmul %191, %2, %cst_50 {dimension_numbers = #tpu.dot_dimension_numbers<[1], [0], [0], [1], [0, 0, 1, 1], [], []>} : vector<8x32xf32>, vector<32x128xf32>, vector<8x128xf32> -> vector<8x128xf32>
    %198 = arith.addf %196, %197 : vector<8x128xf32>
    %199 = vector.extract_strided_slice %198 {offsets = [0, 0], sizes = [8, 32], strides = [1, 1]} : vector<8x128xf32> to vector<8x32xf32>
    %200 = vector.extract_strided_slice %198 {offsets = [0, 32], sizes = [8, 32], strides = [1, 1]} : vector<8x128xf32> to vector<8x32xf32>
    %201 = vector.extract_strided_slice %198 {offsets = [0, 64], sizes = [8, 32], strides = [1, 1]} : vector<8x128xf32> to vector<8x32xf32>
    %202 = vector.extract_strided_slice %198 {offsets = [0, 96], sizes = [8, 32], strides = [1, 1]} : vector<8x128xf32> to vector<8x32xf32>
    %203 = arith.negf %199 : vector<8x32xf32>
    %204 = math.exp %203 : vector<8x32xf32>
    %cst_51 = arith.constant 1.000000e+00 : f32
    %205 = vector.broadcast %cst_51 : f32 to vector<8x32xf32>
    %206 = arith.addf %205, %204 : vector<8x32xf32>
    %207 = arith.divf %205, %206 : vector<8x32xf32>
    %208 = arith.mulf %207, %194 : vector<8x32xf32>
    %209 = arith.negf %200 : vector<8x32xf32>
    %210 = math.exp %209 : vector<8x32xf32>
    %cst_52 = arith.constant 1.000000e+00 : f32
    %211 = vector.broadcast %cst_52 : f32 to vector<8x32xf32>
    %212 = arith.addf %211, %210 : vector<8x32xf32>
    %213 = arith.divf %211, %212 : vector<8x32xf32>
    %214 = math.tanh %202 : vector<8x32xf32>
    %215 = arith.mulf %213, %214 : vector<8x32xf32>
    %216 = arith.addf %208, %215 : vector<8x32xf32>
    %217 = arith.negf %201 : vector<8x32xf32>
    %218 = math.exp %217 : vector<8x32xf32>
    %cst_53 = arith.constant 1.000000e+00 : f32
    %219 = vector.broadcast %cst_53 : f32 to vector<8x32xf32>
    %220 = arith.addf %219, %218 : vector<8x32xf32>
    %221 = arith.divf %219, %220 : vector<8x32xf32>
    %222 = math.tanh %216 : vector<8x32xf32>
    %223 = arith.mulf %221, %222 : vector<8x32xf32>
    %c5_i32 = arith.constant 5 : i32
    %224 = vector.broadcast %c5_i32 : i32 to vector<8x1xi32>
    %225 = arith.cmpi sgt, %0, %224 : vector<8x1xi32>
    %226 = vector.shape_cast %225 : vector<8x1xi1> to vector<8x1xi1>
    %227 = vector.broadcast %226 : vector<8x1xi1> to vector<8x32xi1>
    %228 = arith.select %227, %223, %191 : vector<8x32xi1>, vector<8x32xf32>
    %229 = vector.shape_cast %225 : vector<8x1xi1> to vector<8x1xi1>
    %230 = vector.broadcast %229 : vector<8x1xi1> to vector<8x32xi1>
    %231 = arith.select %230, %216, %194 : vector<8x32xi1>, vector<8x32xf32>
    %c40_54 = arith.constant 40 : index
    %c0_55 = arith.constant 0 : index
    %232 = vector.load %arg12[%c40_54, %c0_55] : memref<64x32xf32, #tpu.memory_space<vmem>>, vector<8x32xf32>
    tpu.vector_store %arg12[%c40_54, %c0_55], %228 {strides = array<i32>} : memref<64x32xf32, #tpu.memory_space<vmem>>, vector<8x32xf32>,
    %c48 = arith.constant 48 : index
    %c0_56 = arith.constant 0 : index
    %233 = vector.load %arg11[%c48, %c0_56] : memref<64x128xf32, #tpu.memory_space<vmem>>, vector<8x128xf32>
    %cst_57 = arith.constant dense<0.000000e+00> : vector<8x128xf32>
    %234 = tpu.matmul %228, %2, %cst_57 {dimension_numbers = #tpu.dot_dimension_numbers<[1], [0], [0], [1], [0, 0, 1, 1], [], []>} : vector<8x32xf32>, vector<32x128xf32>, vector<8x128xf32> -> vector<8x128xf32>
    %235 = arith.addf %233, %234 : vector<8x128xf32>
    %236 = vector.extract_strided_slice %235 {offsets = [0, 0], sizes = [8, 32], strides = [1, 1]} : vector<8x128xf32> to vector<8x32xf32>
    %237 = vector.extract_strided_slice %235 {offsets = [0, 32], sizes = [8, 32], strides = [1, 1]} : vector<8x128xf32> to vector<8x32xf32>
    %238 = vector.extract_strided_slice %235 {offsets = [0, 64], sizes = [8, 32], strides = [1, 1]} : vector<8x128xf32> to vector<8x32xf32>
    %239 = vector.extract_strided_slice %235 {offsets = [0, 96], sizes = [8, 32], strides = [1, 1]} : vector<8x128xf32> to vector<8x32xf32>
    %240 = arith.negf %236 : vector<8x32xf32>
    %241 = math.exp %240 : vector<8x32xf32>
    %cst_58 = arith.constant 1.000000e+00 : f32
    %242 = vector.broadcast %cst_58 : f32 to vector<8x32xf32>
    %243 = arith.addf %242, %241 : vector<8x32xf32>
    %244 = arith.divf %242, %243 : vector<8x32xf32>
    %245 = arith.mulf %244, %231 : vector<8x32xf32>
    %246 = arith.negf %237 : vector<8x32xf32>
    %247 = math.exp %246 : vector<8x32xf32>
    %cst_59 = arith.constant 1.000000e+00 : f32
    %248 = vector.broadcast %cst_59 : f32 to vector<8x32xf32>
    %249 = arith.addf %248, %247 : vector<8x32xf32>
    %250 = arith.divf %248, %249 : vector<8x32xf32>
    %251 = math.tanh %239 : vector<8x32xf32>
    %252 = arith.mulf %250, %251 : vector<8x32xf32>
    %253 = arith.addf %245, %252 : vector<8x32xf32>
    %254 = arith.negf %238 : vector<8x32xf32>
    %255 = math.exp %254 : vector<8x32xf32>
    %cst_60 = arith.constant 1.000000e+00 : f32
    %256 = vector.broadcast %cst_60 : f32 to vector<8x32xf32>
    %257 = arith.addf %256, %255 : vector<8x32xf32>
    %258 = arith.divf %256, %257 : vector<8x32xf32>
    %259 = math.tanh %253 : vector<8x32xf32>
    %260 = arith.mulf %258, %259 : vector<8x32xf32>
    %c6_i32 = arith.constant 6 : i32
    %261 = vector.broadcast %c6_i32 : i32 to vector<8x1xi32>
    %262 = arith.cmpi sgt, %0, %261 : vector<8x1xi32>
    %263 = vector.shape_cast %262 : vector<8x1xi1> to vector<8x1xi1>
    %264 = vector.broadcast %263 : vector<8x1xi1> to vector<8x32xi1>
    %265 = arith.select %264, %260, %228 : vector<8x32xi1>, vector<8x32xf32>
    %266 = vector.shape_cast %262 : vector<8x1xi1> to vector<8x1xi1>
    %267 = vector.broadcast %266 : vector<8x1xi1> to vector<8x32xi1>
    %268 = arith.select %267, %253, %231 : vector<8x32xi1>, vector<8x32xf32>
    %c48_61 = arith.constant 48 : index
    %c0_62 = arith.constant 0 : index
    %269 = vector.load %arg12[%c48_61, %c0_62] : memref<64x32xf32, #tpu.memory_space<vmem>>, vector<8x32xf32>
    tpu.vector_store %arg12[%c48_61, %c0_62], %265 {strides = array<i32>} : memref<64x32xf32, #tpu.memory_space<vmem>>, vector<8x32xf32>,
    %c56 = arith.constant 56 : index
    %c0_63 = arith.constant 0 : index
    %270 = vector.load %arg11[%c56, %c0_63] : memref<64x128xf32, #tpu.memory_space<vmem>>, vector<8x128xf32>
    %cst_64 = arith.constant dense<0.000000e+00> : vector<8x128xf32>
    %271 = tpu.matmul %265, %2, %cst_64 {dimension_numbers = #tpu.dot_dimension_numbers<[1], [0], [0], [1], [0, 0, 1, 1], [], []>} : vector<8x32xf32>, vector<32x128xf32>, vector<8x128xf32> -> vector<8x128xf32>
    %272 = arith.addf %270, %271 : vector<8x128xf32>
    %273 = vector.extract_strided_slice %272 {offsets = [0, 0], sizes = [8, 32], strides = [1, 1]} : vector<8x128xf32> to vector<8x32xf32>
    %274 = vector.extract_strided_slice %272 {offsets = [0, 32], sizes = [8, 32], strides = [1, 1]} : vector<8x128xf32> to vector<8x32xf32>
    %275 = vector.extract_strided_slice %272 {offsets = [0, 64], sizes = [8, 32], strides = [1, 1]} : vector<8x128xf32> to vector<8x32xf32>
    %276 = vector.extract_strided_slice %272 {offsets = [0, 96], sizes = [8, 32], strides = [1, 1]} : vector<8x128xf32> to vector<8x32xf32>
    %277 = arith.negf %273 : vector<8x32xf32>
    %278 = math.exp %277 : vector<8x32xf32>
    %cst_65 = arith.constant 1.000000e+00 : f32
    %279 = vector.broadcast %cst_65 : f32 to vector<8x32xf32>
    %280 = arith.addf %279, %278 : vector<8x32xf32>
    %281 = arith.divf %279, %280 : vector<8x32xf32>
    %282 = arith.mulf %281, %268 : vector<8x32xf32>
    %283 = arith.negf %274 : vector<8x32xf32>
    %284 = math.exp %283 : vector<8x32xf32>
    %cst_66 = arith.constant 1.000000e+00 : f32
    %285 = vector.broadcast %cst_66 : f32 to vector<8x32xf32>
    %286 = arith.addf %285, %284 : vector<8x32xf32>
    %287 = arith.divf %285, %286 : vector<8x32xf32>
    %288 = math.tanh %276 : vector<8x32xf32>
    %289 = arith.mulf %287, %288 : vector<8x32xf32>
    %290 = arith.addf %282, %289 : vector<8x32xf32>
    %291 = arith.negf %275 : vector<8x32xf32>
    %292 = math.exp %291 : vector<8x32xf32>
    %cst_67 = arith.constant 1.000000e+00 : f32
    %293 = vector.broadcast %cst_67 : f32 to vector<8x32xf32>
    %294 = arith.addf %293, %292 : vector<8x32xf32>
    %295 = arith.divf %293, %294 : vector<8x32xf32>
    %296 = math.tanh %290 : vector<8x32xf32>
    %297 = arith.mulf %295, %296 : vector<8x32xf32>
    %c7_i32 = arith.constant 7 : i32
    %298 = vector.broadcast %c7_i32 : i32 to vector<8x1xi32>
    %299 = arith.cmpi sgt, %0, %298 : vector<8x1xi32>
    %300 = vector.shape_cast %299 : vector<8x1xi1> to vector<8x1xi1>
    %301 = vector.broadcast %300 : vector<8x1xi1> to vector<8x32xi1>
    %302 = arith.select %301, %297, %265 : vector<8x32xi1>, vector<8x32xf32>
    %c56_68 = arith.constant 56 : index
    %c0_69 = arith.constant 0 : index
    %303 = vector.load %arg12[%c56_68, %c0_69] : memref<64x32xf32, #tpu.memory_space<vmem>>, vector<8x32xf32>
    tpu.vector_store %arg12[%c56_68, %c0_69], %302 {strides = array<i32>} : memref<64x32xf32, #tpu.memory_space<vmem>>, vector<8x32xf32>,
    %c0_70 = arith.constant 0 : index
    %c0_71 = arith.constant 0 : index
    %304 = vector.load %arg5[%c0_70, %c0_71] : memref<32x128xf32, #tpu.memory_space<vmem>>, vector<32x128xf32>
    %c0_72 = arith.constant 0 : index
    %c0_73 = arith.constant 0 : index
    %305 = vector.load %arg6[%c0_72, %c0_73] : memref<32x128xf32, #tpu.memory_space<vmem>>, vector<32x128xf32>
    %c0_74 = arith.constant 0 : index
    %c0_75 = arith.constant 0 : index
    %306 = vector.load %arg7[%c0_74, %c0_75] : memref<1x128xf32, #tpu.memory_space<vmem>>, vector<1x128xf32>
    %c0_76 = arith.constant 0 : index
    %c0_77 = arith.constant 0 : index
    %307 = vector.load %arg12[%c0_76, %c0_77] : memref<64x32xf32, #tpu.memory_space<vmem>>, vector<64x32xf32>
    %cst_78 = arith.constant dense<0.000000e+00> : vector<64x128xf32>
    %308 = tpu.matmul %307, %304, %cst_78 {dimension_numbers = #tpu.dot_dimension_numbers<[1], [0], [0], [1], [0, 0, 1, 1], [], []>} : vector<64x32xf32>, vector<32x128xf32>, vector<64x128xf32> -> vector<64x128xf32>
    %309 = vector.broadcast %306 : vector<1x128xf32> to vector<64x128xf32>
    %310 = arith.addf %308, %309 : vector<64x128xf32>
    %c0_79 = arith.constant 0 : index
    %c0_80 = arith.constant 0 : index
    %311 = vector.load %arg11[%c0_79, %c0_80] : memref<64x128xf32, #tpu.memory_space<vmem>>, vector<64x128xf32>
    tpu.vector_store %arg11[%c0_79, %c0_80], %310 {strides = array<i32>} : memref<64x128xf32, #tpu.memory_space<vmem>>, vector<64x128xf32>,
    %cst_81 = arith.constant 0.000000e+00 : f32
    %312 = vector.broadcast %cst_81 : f32 to vector<8x32xf32>
    %cst_82 = arith.constant 0.000000e+00 : f32
    %313 = vector.broadcast %cst_82 : f32 to vector<8x32xf32>
    %c0_83 = arith.constant 0 : index
    %c0_84 = arith.constant 0 : index
    %314 = vector.load %arg11[%c0_83, %c0_84] : memref<64x128xf32, #tpu.memory_space<vmem>>, vector<8x128xf32>
    %cst_85 = arith.constant dense<0.000000e+00> : vector<8x128xf32>
    %315 = tpu.matmul %312, %305, %cst_85 {dimension_numbers = #tpu.dot_dimension_numbers<[1], [0], [0], [1], [0, 0, 1, 1], [], []>} : vector<8x32xf32>, vector<32x128xf32>, vector<8x128xf32> -> vector<8x128xf32>
    %316 = arith.addf %314, %315 : vector<8x128xf32>
    %317 = vector.extract_strided_slice %316 {offsets = [0, 0], sizes = [8, 32], strides = [1, 1]} : vector<8x128xf32> to vector<8x32xf32>
    %318 = vector.extract_strided_slice %316 {offsets = [0, 32], sizes = [8, 32], strides = [1, 1]} : vector<8x128xf32> to vector<8x32xf32>
    %319 = vector.extract_strided_slice %316 {offsets = [0, 64], sizes = [8, 32], strides = [1, 1]} : vector<8x128xf32> to vector<8x32xf32>
    %320 = vector.extract_strided_slice %316 {offsets = [0, 96], sizes = [8, 32], strides = [1, 1]} : vector<8x128xf32> to vector<8x32xf32>
    %321 = arith.negf %317 : vector<8x32xf32>
    %322 = math.exp %321 : vector<8x32xf32>
    %cst_86 = arith.constant 1.000000e+00 : f32
    %323 = vector.broadcast %cst_86 : f32 to vector<8x32xf32>
    %324 = arith.addf %323, %322 : vector<8x32xf32>
    %325 = arith.divf %323, %324 : vector<8x32xf32>
    %326 = arith.mulf %325, %313 : vector<8x32xf32>
    %327 = arith.negf %318 : vector<8x32xf32>
    %328 = math.exp %327 : vector<8x32xf32>
    %cst_87 = arith.constant 1.000000e+00 : f32
    %329 = vector.broadcast %cst_87 : f32 to vector<8x32xf32>
    %330 = arith.addf %329, %328 : vector<8x32xf32>
    %331 = arith.divf %329, %330 : vector<8x32xf32>
    %332 = math.tanh %320 : vector<8x32xf32>
    %333 = arith.mulf %331, %332 : vector<8x32xf32>
    %334 = arith.addf %326, %333 : vector<8x32xf32>
    %335 = arith.negf %319 : vector<8x32xf32>
    %336 = math.exp %335 : vector<8x32xf32>
    %cst_88 = arith.constant 1.000000e+00 : f32
    %337 = vector.broadcast %cst_88 : f32 to vector<8x32xf32>
    %338 = arith.addf %337, %336 : vector<8x32xf32>
    %339 = arith.divf %337, %338 : vector<8x32xf32>
    %340 = math.tanh %334 : vector<8x32xf32>
    %341 = arith.mulf %339, %340 : vector<8x32xf32>
    %c0_i32_89 = arith.constant 0 : i32
    %342 = vector.broadcast %c0_i32_89 : i32 to vector<8x1xi32>
    %343 = arith.cmpi sgt, %0, %342 : vector<8x1xi32>
    %344 = vector.shape_cast %343 : vector<8x1xi1> to vector<8x1xi1>
    %345 = vector.broadcast %344 : vector<8x1xi1> to vector<8x32xi1>
    %346 = arith.select %345, %341, %312 : vector<8x32xi1>, vector<8x32xf32>
    %347 = vector.shape_cast %343 : vector<8x1xi1> to vector<8x1xi1>
    %348 = vector.broadcast %347 : vector<8x1xi1> to vector<8x32xi1>
    %349 = arith.select %348, %334, %313 : vector<8x32xi1>, vector<8x32xf32>
    %c0_90 = arith.constant 0 : index
    %c0_91 = arith.constant 0 : index
    %350 = vector.load %arg12[%c0_90, %c0_91] : memref<64x32xf32, #tpu.memory_space<vmem>>, vector<8x32xf32>
    tpu.vector_store %arg12[%c0_90, %c0_91], %346 {strides = array<i32>} : memref<64x32xf32, #tpu.memory_space<vmem>>, vector<8x32xf32>,
    %c8_92 = arith.constant 8 : index
    %c0_93 = arith.constant 0 : index
    %351 = vector.load %arg11[%c8_92, %c0_93] : memref<64x128xf32, #tpu.memory_space<vmem>>, vector<8x128xf32>
    %cst_94 = arith.constant dense<0.000000e+00> : vector<8x128xf32>
    %352 = tpu.matmul %346, %305, %cst_94 {dimension_numbers = #tpu.dot_dimension_numbers<[1], [0], [0], [1], [0, 0, 1, 1], [], []>} : vector<8x32xf32>, vector<32x128xf32>, vector<8x128xf32> -> vector<8x128xf32>
    %353 = arith.addf %351, %352 : vector<8x128xf32>
    %354 = vector.extract_strided_slice %353 {offsets = [0, 0], sizes = [8, 32], strides = [1, 1]} : vector<8x128xf32> to vector<8x32xf32>
    %355 = vector.extract_strided_slice %353 {offsets = [0, 32], sizes = [8, 32], strides = [1, 1]} : vector<8x128xf32> to vector<8x32xf32>
    %356 = vector.extract_strided_slice %353 {offsets = [0, 64], sizes = [8, 32], strides = [1, 1]} : vector<8x128xf32> to vector<8x32xf32>
    %357 = vector.extract_strided_slice %353 {offsets = [0, 96], sizes = [8, 32], strides = [1, 1]} : vector<8x128xf32> to vector<8x32xf32>
    %358 = arith.negf %354 : vector<8x32xf32>
    %359 = math.exp %358 : vector<8x32xf32>
    %cst_95 = arith.constant 1.000000e+00 : f32
    %360 = vector.broadcast %cst_95 : f32 to vector<8x32xf32>
    %361 = arith.addf %360, %359 : vector<8x32xf32>
    %362 = arith.divf %360, %361 : vector<8x32xf32>
    %363 = arith.mulf %362, %349 : vector<8x32xf32>
    %364 = arith.negf %355 : vector<8x32xf32>
    %365 = math.exp %364 : vector<8x32xf32>
    %cst_96 = arith.constant 1.000000e+00 : f32
    %366 = vector.broadcast %cst_96 : f32 to vector<8x32xf32>
    %367 = arith.addf %366, %365 : vector<8x32xf32>
    %368 = arith.divf %366, %367 : vector<8x32xf32>
    %369 = math.tanh %357 : vector<8x32xf32>
    %370 = arith.mulf %368, %369 : vector<8x32xf32>
    %371 = arith.addf %363, %370 : vector<8x32xf32>
    %372 = arith.negf %356 : vector<8x32xf32>
    %373 = math.exp %372 : vector<8x32xf32>
    %cst_97 = arith.constant 1.000000e+00 : f32
    %374 = vector.broadcast %cst_97 : f32 to vector<8x32xf32>
    %375 = arith.addf %374, %373 : vector<8x32xf32>
    %376 = arith.divf %374, %375 : vector<8x32xf32>
    %377 = math.tanh %371 : vector<8x32xf32>
    %378 = arith.mulf %376, %377 : vector<8x32xf32>
    %c1_i32_98 = arith.constant 1 : i32
    %379 = vector.broadcast %c1_i32_98 : i32 to vector<8x1xi32>
    %380 = arith.cmpi sgt, %0, %379 : vector<8x1xi32>
    %381 = vector.shape_cast %380 : vector<8x1xi1> to vector<8x1xi1>
    %382 = vector.broadcast %381 : vector<8x1xi1> to vector<8x32xi1>
    %383 = arith.select %382, %378, %346 : vector<8x32xi1>, vector<8x32xf32>
    %384 = vector.shape_cast %380 : vector<8x1xi1> to vector<8x1xi1>
    %385 = vector.broadcast %384 : vector<8x1xi1> to vector<8x32xi1>
    %386 = arith.select %385, %371, %349 : vector<8x32xi1>, vector<8x32xf32>
    %c8_99 = arith.constant 8 : index
    %c0_100 = arith.constant 0 : index
    %387 = vector.load %arg12[%c8_99, %c0_100] : memref<64x32xf32, #tpu.memory_space<vmem>>, vector<8x32xf32>
    tpu.vector_store %arg12[%c8_99, %c0_100], %383 {strides = array<i32>} : memref<64x32xf32, #tpu.memory_space<vmem>>, vector<8x32xf32>,
    %c16_101 = arith.constant 16 : index
    %c0_102 = arith.constant 0 : index
    %388 = vector.load %arg11[%c16_101, %c0_102] : memref<64x128xf32, #tpu.memory_space<vmem>>, vector<8x128xf32>
    %cst_103 = arith.constant dense<0.000000e+00> : vector<8x128xf32>
    %389 = tpu.matmul %383, %305, %cst_103 {dimension_numbers = #tpu.dot_dimension_numbers<[1], [0], [0], [1], [0, 0, 1, 1], [], []>} : vector<8x32xf32>, vector<32x128xf32>, vector<8x128xf32> -> vector<8x128xf32>
    %390 = arith.addf %388, %389 : vector<8x128xf32>
    %391 = vector.extract_strided_slice %390 {offsets = [0, 0], sizes = [8, 32], strides = [1, 1]} : vector<8x128xf32> to vector<8x32xf32>
    %392 = vector.extract_strided_slice %390 {offsets = [0, 32], sizes = [8, 32], strides = [1, 1]} : vector<8x128xf32> to vector<8x32xf32>
    %393 = vector.extract_strided_slice %390 {offsets = [0, 64], sizes = [8, 32], strides = [1, 1]} : vector<8x128xf32> to vector<8x32xf32>
    %394 = vector.extract_strided_slice %390 {offsets = [0, 96], sizes = [8, 32], strides = [1, 1]} : vector<8x128xf32> to vector<8x32xf32>
    %395 = arith.negf %391 : vector<8x32xf32>
    %396 = math.exp %395 : vector<8x32xf32>
    %cst_104 = arith.constant 1.000000e+00 : f32
    %397 = vector.broadcast %cst_104 : f32 to vector<8x32xf32>
    %398 = arith.addf %397, %396 : vector<8x32xf32>
    %399 = arith.divf %397, %398 : vector<8x32xf32>
    %400 = arith.mulf %399, %386 : vector<8x32xf32>
    %401 = arith.negf %392 : vector<8x32xf32>
    %402 = math.exp %401 : vector<8x32xf32>
    %cst_105 = arith.constant 1.000000e+00 : f32
    %403 = vector.broadcast %cst_105 : f32 to vector<8x32xf32>
    %404 = arith.addf %403, %402 : vector<8x32xf32>
    %405 = arith.divf %403, %404 : vector<8x32xf32>
    %406 = math.tanh %394 : vector<8x32xf32>
    %407 = arith.mulf %405, %406 : vector<8x32xf32>
    %408 = arith.addf %400, %407 : vector<8x32xf32>
    %409 = arith.negf %393 : vector<8x32xf32>
    %410 = math.exp %409 : vector<8x32xf32>
    %cst_106 = arith.constant 1.000000e+00 : f32
    %411 = vector.broadcast %cst_106 : f32 to vector<8x32xf32>
    %412 = arith.addf %411, %410 : vector<8x32xf32>
    %413 = arith.divf %411, %412 : vector<8x32xf32>
    %414 = math.tanh %408 : vector<8x32xf32>
    %415 = arith.mulf %413, %414 : vector<8x32xf32>
    %c2_i32_107 = arith.constant 2 : i32
    %416 = vector.broadcast %c2_i32_107 : i32 to vector<8x1xi32>
    %417 = arith.cmpi sgt, %0, %416 : vector<8x1xi32>
    %418 = vector.shape_cast %417 : vector<8x1xi1> to vector<8x1xi1>
    %419 = vector.broadcast %418 : vector<8x1xi1> to vector<8x32xi1>
    %420 = arith.select %419, %415, %383 : vector<8x32xi1>, vector<8x32xf32>
    %421 = vector.shape_cast %417 : vector<8x1xi1> to vector<8x1xi1>
    %422 = vector.broadcast %421 : vector<8x1xi1> to vector<8x32xi1>
    %423 = arith.select %422, %408, %386 : vector<8x32xi1>, vector<8x32xf32>
    %c16_108 = arith.constant 16 : index
    %c0_109 = arith.constant 0 : index
    %424 = vector.load %arg12[%c16_108, %c0_109] : memref<64x32xf32, #tpu.memory_space<vmem>>, vector<8x32xf32>
    tpu.vector_store %arg12[%c16_108, %c0_109], %420 {strides = array<i32>} : memref<64x32xf32, #tpu.memory_space<vmem>>, vector<8x32xf32>,
    %c24_110 = arith.constant 24 : index
    %c0_111 = arith.constant 0 : index
    %425 = vector.load %arg11[%c24_110, %c0_111] : memref<64x128xf32, #tpu.memory_space<vmem>>, vector<8x128xf32>
    %cst_112 = arith.constant dense<0.000000e+00> : vector<8x128xf32>
    %426 = tpu.matmul %420, %305, %cst_112 {dimension_numbers = #tpu.dot_dimension_numbers<[1], [0], [0], [1], [0, 0, 1, 1], [], []>} : vector<8x32xf32>, vector<32x128xf32>, vector<8x128xf32> -> vector<8x128xf32>
    %427 = arith.addf %425, %426 : vector<8x128xf32>
    %428 = vector.extract_strided_slice %427 {offsets = [0, 0], sizes = [8, 32], strides = [1, 1]} : vector<8x128xf32> to vector<8x32xf32>
    %429 = vector.extract_strided_slice %427 {offsets = [0, 32], sizes = [8, 32], strides = [1, 1]} : vector<8x128xf32> to vector<8x32xf32>
    %430 = vector.extract_strided_slice %427 {offsets = [0, 64], sizes = [8, 32], strides = [1, 1]} : vector<8x128xf32> to vector<8x32xf32>
    %431 = vector.extract_strided_slice %427 {offsets = [0, 96], sizes = [8, 32], strides = [1, 1]} : vector<8x128xf32> to vector<8x32xf32>
    %432 = arith.negf %428 : vector<8x32xf32>
    %433 = math.exp %432 : vector<8x32xf32>
    %cst_113 = arith.constant 1.000000e+00 : f32
    %434 = vector.broadcast %cst_113 : f32 to vector<8x32xf32>
    %435 = arith.addf %434, %433 : vector<8x32xf32>
    %436 = arith.divf %434, %435 : vector<8x32xf32>
    %437 = arith.mulf %436, %423 : vector<8x32xf32>
    %438 = arith.negf %429 : vector<8x32xf32>
    %439 = math.exp %438 : vector<8x32xf32>
    %cst_114 = arith.constant 1.000000e+00 : f32
    %440 = vector.broadcast %cst_114 : f32 to vector<8x32xf32>
    %441 = arith.addf %440, %439 : vector<8x32xf32>
    %442 = arith.divf %440, %441 : vector<8x32xf32>
    %443 = math.tanh %431 : vector<8x32xf32>
    %444 = arith.mulf %442, %443 : vector<8x32xf32>
    %445 = arith.addf %437, %444 : vector<8x32xf32>
    %446 = arith.negf %430 : vector<8x32xf32>
    %447 = math.exp %446 : vector<8x32xf32>
    %cst_115 = arith.constant 1.000000e+00 : f32
    %448 = vector.broadcast %cst_115 : f32 to vector<8x32xf32>
    %449 = arith.addf %448, %447 : vector<8x32xf32>
    %450 = arith.divf %448, %449 : vector<8x32xf32>
    %451 = math.tanh %445 : vector<8x32xf32>
    %452 = arith.mulf %450, %451 : vector<8x32xf32>
    %c3_i32_116 = arith.constant 3 : i32
    %453 = vector.broadcast %c3_i32_116 : i32 to vector<8x1xi32>
    %454 = arith.cmpi sgt, %0, %453 : vector<8x1xi32>
    %455 = vector.shape_cast %454 : vector<8x1xi1> to vector<8x1xi1>
    %456 = vector.broadcast %455 : vector<8x1xi1> to vector<8x32xi1>
    %457 = arith.select %456, %452, %420 : vector<8x32xi1>, vector<8x32xf32>
    %458 = vector.shape_cast %454 : vector<8x1xi1> to vector<8x1xi1>
    %459 = vector.broadcast %458 : vector<8x1xi1> to vector<8x32xi1>
    %460 = arith.select %459, %445, %423 : vector<8x32xi1>, vector<8x32xf32>
    %c24_117 = arith.constant 24 : index
    %c0_118 = arith.constant 0 : index
    %461 = vector.load %arg12[%c24_117, %c0_118] : memref<64x32xf32, #tpu.memory_space<vmem>>, vector<8x32xf32>
    tpu.vector_store %arg12[%c24_117, %c0_118], %457 {strides = array<i32>} : memref<64x32xf32, #tpu.memory_space<vmem>>, vector<8x32xf32>,
    %c32_119 = arith.constant 32 : index
    %c0_120 = arith.constant 0 : index
    %462 = vector.load %arg11[%c32_119, %c0_120] : memref<64x128xf32, #tpu.memory_space<vmem>>, vector<8x128xf32>
    %cst_121 = arith.constant dense<0.000000e+00> : vector<8x128xf32>
    %463 = tpu.matmul %457, %305, %cst_121 {dimension_numbers = #tpu.dot_dimension_numbers<[1], [0], [0], [1], [0, 0, 1, 1], [], []>} : vector<8x32xf32>, vector<32x128xf32>, vector<8x128xf32> -> vector<8x128xf32>
    %464 = arith.addf %462, %463 : vector<8x128xf32>
    %465 = vector.extract_strided_slice %464 {offsets = [0, 0], sizes = [8, 32], strides = [1, 1]} : vector<8x128xf32> to vector<8x32xf32>
    %466 = vector.extract_strided_slice %464 {offsets = [0, 32], sizes = [8, 32], strides = [1, 1]} : vector<8x128xf32> to vector<8x32xf32>
    %467 = vector.extract_strided_slice %464 {offsets = [0, 64], sizes = [8, 32], strides = [1, 1]} : vector<8x128xf32> to vector<8x32xf32>
    %468 = vector.extract_strided_slice %464 {offsets = [0, 96], sizes = [8, 32], strides = [1, 1]} : vector<8x128xf32> to vector<8x32xf32>
    %469 = arith.negf %465 : vector<8x32xf32>
    %470 = math.exp %469 : vector<8x32xf32>
    %cst_122 = arith.constant 1.000000e+00 : f32
    %471 = vector.broadcast %cst_122 : f32 to vector<8x32xf32>
    %472 = arith.addf %471, %470 : vector<8x32xf32>
    %473 = arith.divf %471, %472 : vector<8x32xf32>
    %474 = arith.mulf %473, %460 : vector<8x32xf32>
    %475 = arith.negf %466 : vector<8x32xf32>
    %476 = math.exp %475 : vector<8x32xf32>
    %cst_123 = arith.constant 1.000000e+00 : f32
    %477 = vector.broadcast %cst_123 : f32 to vector<8x32xf32>
    %478 = arith.addf %477, %476 : vector<8x32xf32>
    %479 = arith.divf %477, %478 : vector<8x32xf32>
    %480 = math.tanh %468 : vector<8x32xf32>
    %481 = arith.mulf %479, %480 : vector<8x32xf32>
    %482 = arith.addf %474, %481 : vector<8x32xf32>
    %483 = arith.negf %467 : vector<8x32xf32>
    %484 = math.exp %483 : vector<8x32xf32>
    %cst_124 = arith.constant 1.000000e+00 : f32
    %485 = vector.broadcast %cst_124 : f32 to vector<8x32xf32>
    %486 = arith.addf %485, %484 : vector<8x32xf32>
    %487 = arith.divf %485, %486 : vector<8x32xf32>
    %488 = math.tanh %482 : vector<8x32xf32>
    %489 = arith.mulf %487, %488 : vector<8x32xf32>
    %c4_i32_125 = arith.constant 4 : i32
    %490 = vector.broadcast %c4_i32_125 : i32 to vector<8x1xi32>
    %491 = arith.cmpi sgt, %0, %490 : vector<8x1xi32>
    %492 = vector.shape_cast %491 : vector<8x1xi1> to vector<8x1xi1>
    %493 = vector.broadcast %492 : vector<8x1xi1> to vector<8x32xi1>
    %494 = arith.select %493, %489, %457 : vector<8x32xi1>, vector<8x32xf32>
    %495 = vector.shape_cast %491 : vector<8x1xi1> to vector<8x1xi1>
    %496 = vector.broadcast %495 : vector<8x1xi1> to vector<8x32xi1>
    %497 = arith.select %496, %482, %460 : vector<8x32xi1>, vector<8x32xf32>
    %c32_126 = arith.constant 32 : index
    %c0_127 = arith.constant 0 : index
    %498 = vector.load %arg12[%c32_126, %c0_127] : memref<64x32xf32, #tpu.memory_space<vmem>>, vector<8x32xf32>
    tpu.vector_store %arg12[%c32_126, %c0_127], %494 {strides = array<i32>} : memref<64x32xf32, #tpu.memory_space<vmem>>, vector<8x32xf32>,
    %c40_128 = arith.constant 40 : index
    %c0_129 = arith.constant 0 : index
    %499 = vector.load %arg11[%c40_128, %c0_129] : memref<64x128xf32, #tpu.memory_space<vmem>>, vector<8x128xf32>
    %cst_130 = arith.constant dense<0.000000e+00> : vector<8x128xf32>
    %500 = tpu.matmul %494, %305, %cst_130 {dimension_numbers = #tpu.dot_dimension_numbers<[1], [0], [0], [1], [0, 0, 1, 1], [], []>} : vector<8x32xf32>, vector<32x128xf32>, vector<8x128xf32> -> vector<8x128xf32>
    %501 = arith.addf %499, %500 : vector<8x128xf32>
    %502 = vector.extract_strided_slice %501 {offsets = [0, 0], sizes = [8, 32], strides = [1, 1]} : vector<8x128xf32> to vector<8x32xf32>
    %503 = vector.extract_strided_slice %501 {offsets = [0, 32], sizes = [8, 32], strides = [1, 1]} : vector<8x128xf32> to vector<8x32xf32>
    %504 = vector.extract_strided_slice %501 {offsets = [0, 64], sizes = [8, 32], strides = [1, 1]} : vector<8x128xf32> to vector<8x32xf32>
    %505 = vector.extract_strided_slice %501 {offsets = [0, 96], sizes = [8, 32], strides = [1, 1]} : vector<8x128xf32> to vector<8x32xf32>
    %506 = arith.negf %502 : vector<8x32xf32>
    %507 = math.exp %506 : vector<8x32xf32>
    %cst_131 = arith.constant 1.000000e+00 : f32
    %508 = vector.broadcast %cst_131 : f32 to vector<8x32xf32>
    %509 = arith.addf %508, %507 : vector<8x32xf32>
    %510 = arith.divf %508, %509 : vector<8x32xf32>
    %511 = arith.mulf %510, %497 : vector<8x32xf32>
    %512 = arith.negf %503 : vector<8x32xf32>
    %513 = math.exp %512 : vector<8x32xf32>
    %cst_132 = arith.constant 1.000000e+00 : f32
    %514 = vector.broadcast %cst_132 : f32 to vector<8x32xf32>
    %515 = arith.addf %514, %513 : vector<8x32xf32>
    %516 = arith.divf %514, %515 : vector<8x32xf32>
    %517 = math.tanh %505 : vector<8x32xf32>
    %518 = arith.mulf %516, %517 : vector<8x32xf32>
    %519 = arith.addf %511, %518 : vector<8x32xf32>
    %520 = arith.negf %504 : vector<8x32xf32>
    %521 = math.exp %520 : vector<8x32xf32>
    %cst_133 = arith.constant 1.000000e+00 : f32
    %522 = vector.broadcast %cst_133 : f32 to vector<8x32xf32>
    %523 = arith.addf %522, %521 : vector<8x32xf32>
    %524 = arith.divf %522, %523 : vector<8x32xf32>
    %525 = math.tanh %519 : vector<8x32xf32>
    %526 = arith.mulf %524, %525 : vector<8x32xf32>
    %c5_i32_134 = arith.constant 5 : i32
    %527 = vector.broadcast %c5_i32_134 : i32 to vector<8x1xi32>
    %528 = arith.cmpi sgt, %0, %527 : vector<8x1xi32>
    %529 = vector.shape_cast %528 : vector<8x1xi1> to vector<8x1xi1>
    %530 = vector.broadcast %529 : vector<8x1xi1> to vector<8x32xi1>
    %531 = arith.select %530, %526, %494 : vector<8x32xi1>, vector<8x32xf32>
    %532 = vector.shape_cast %528 : vector<8x1xi1> to vector<8x1xi1>
    %533 = vector.broadcast %532 : vector<8x1xi1> to vector<8x32xi1>
    %534 = arith.select %533, %519, %497 : vector<8x32xi1>, vector<8x32xf32>
    %c40_135 = arith.constant 40 : index
    %c0_136 = arith.constant 0 : index
    %535 = vector.load %arg12[%c40_135, %c0_136] : memref<64x32xf32, #tpu.memory_space<vmem>>, vector<8x32xf32>
    tpu.vector_store %arg12[%c40_135, %c0_136], %531 {strides = array<i32>} : memref<64x32xf32, #tpu.memory_space<vmem>>, vector<8x32xf32>,
    %c48_137 = arith.constant 48 : index
    %c0_138 = arith.constant 0 : index
    %536 = vector.load %arg11[%c48_137, %c0_138] : memref<64x128xf32, #tpu.memory_space<vmem>>, vector<8x128xf32>
    %cst_139 = arith.constant dense<0.000000e+00> : vector<8x128xf32>
    %537 = tpu.matmul %531, %305, %cst_139 {dimension_numbers = #tpu.dot_dimension_numbers<[1], [0], [0], [1], [0, 0, 1, 1], [], []>} : vector<8x32xf32>, vector<32x128xf32>, vector<8x128xf32> -> vector<8x128xf32>
    %538 = arith.addf %536, %537 : vector<8x128xf32>
    %539 = vector.extract_strided_slice %538 {offsets = [0, 0], sizes = [8, 32], strides = [1, 1]} : vector<8x128xf32> to vector<8x32xf32>
    %540 = vector.extract_strided_slice %538 {offsets = [0, 32], sizes = [8, 32], strides = [1, 1]} : vector<8x128xf32> to vector<8x32xf32>
    %541 = vector.extract_strided_slice %538 {offsets = [0, 64], sizes = [8, 32], strides = [1, 1]} : vector<8x128xf32> to vector<8x32xf32>
    %542 = vector.extract_strided_slice %538 {offsets = [0, 96], sizes = [8, 32], strides = [1, 1]} : vector<8x128xf32> to vector<8x32xf32>
    %543 = arith.negf %539 : vector<8x32xf32>
    %544 = math.exp %543 : vector<8x32xf32>
    %cst_140 = arith.constant 1.000000e+00 : f32
    %545 = vector.broadcast %cst_140 : f32 to vector<8x32xf32>
    %546 = arith.addf %545, %544 : vector<8x32xf32>
    %547 = arith.divf %545, %546 : vector<8x32xf32>
    %548 = arith.mulf %547, %534 : vector<8x32xf32>
    %549 = arith.negf %540 : vector<8x32xf32>
    %550 = math.exp %549 : vector<8x32xf32>
    %cst_141 = arith.constant 1.000000e+00 : f32
    %551 = vector.broadcast %cst_141 : f32 to vector<8x32xf32>
    %552 = arith.addf %551, %550 : vector<8x32xf32>
    %553 = arith.divf %551, %552 : vector<8x32xf32>
    %554 = math.tanh %542 : vector<8x32xf32>
    %555 = arith.mulf %553, %554 : vector<8x32xf32>
    %556 = arith.addf %548, %555 : vector<8x32xf32>
    %557 = arith.negf %541 : vector<8x32xf32>
    %558 = math.exp %557 : vector<8x32xf32>
    %cst_142 = arith.constant 1.000000e+00 : f32
    %559 = vector.broadcast %cst_142 : f32 to vector<8x32xf32>
    %560 = arith.addf %559, %558 : vector<8x32xf32>
    %561 = arith.divf %559, %560 : vector<8x32xf32>
    %562 = math.tanh %556 : vector<8x32xf32>
    %563 = arith.mulf %561, %562 : vector<8x32xf32>
    %c6_i32_143 = arith.constant 6 : i32
    %564 = vector.broadcast %c6_i32_143 : i32 to vector<8x1xi32>
    %565 = arith.cmpi sgt, %0, %564 : vector<8x1xi32>
    %566 = vector.shape_cast %565 : vector<8x1xi1> to vector<8x1xi1>
    %567 = vector.broadcast %566 : vector<8x1xi1> to vector<8x32xi1>
    %568 = arith.select %567, %563, %531 : vector<8x32xi1>, vector<8x32xf32>
    %569 = vector.shape_cast %565 : vector<8x1xi1> to vector<8x1xi1>
    %570 = vector.broadcast %569 : vector<8x1xi1> to vector<8x32xi1>
    %571 = arith.select %570, %556, %534 : vector<8x32xi1>, vector<8x32xf32>
    %c48_144 = arith.constant 48 : index
    %c0_145 = arith.constant 0 : index
    %572 = vector.load %arg12[%c48_144, %c0_145] : memref<64x32xf32, #tpu.memory_space<vmem>>, vector<8x32xf32>
    tpu.vector_store %arg12[%c48_144, %c0_145], %568 {strides = array<i32>} : memref<64x32xf32, #tpu.memory_space<vmem>>, vector<8x32xf32>,
    %c56_146 = arith.constant 56 : index
    %c0_147 = arith.constant 0 : index
    %573 = vector.load %arg11[%c56_146, %c0_147] : memref<64x128xf32, #tpu.memory_space<vmem>>, vector<8x128xf32>
    %cst_148 = arith.constant dense<0.000000e+00> : vector<8x128xf32>
    %574 = tpu.matmul %568, %305, %cst_148 {dimension_numbers = #tpu.dot_dimension_numbers<[1], [0], [0], [1], [0, 0, 1, 1], [], []>} : vector<8x32xf32>, vector<32x128xf32>, vector<8x128xf32> -> vector<8x128xf32>
    %575 = arith.addf %573, %574 : vector<8x128xf32>
    %576 = vector.extract_strided_slice %575 {offsets = [0, 0], sizes = [8, 32], strides = [1, 1]} : vector<8x128xf32> to vector<8x32xf32>
    %577 = vector.extract_strided_slice %575 {offsets = [0, 32], sizes = [8, 32], strides = [1, 1]} : vector<8x128xf32> to vector<8x32xf32>
    %578 = vector.extract_strided_slice %575 {offsets = [0, 64], sizes = [8, 32], strides = [1, 1]} : vector<8x128xf32> to vector<8x32xf32>
    %579 = vector.extract_strided_slice %575 {offsets = [0, 96], sizes = [8, 32], strides = [1, 1]} : vector<8x128xf32> to vector<8x32xf32>
    %580 = arith.negf %576 : vector<8x32xf32>
    %581 = math.exp %580 : vector<8x32xf32>
    %cst_149 = arith.constant 1.000000e+00 : f32
    %582 = vector.broadcast %cst_149 : f32 to vector<8x32xf32>
    %583 = arith.addf %582, %581 : vector<8x32xf32>
    %584 = arith.divf %582, %583 : vector<8x32xf32>
    %585 = arith.mulf %584, %571 : vector<8x32xf32>
    %586 = arith.negf %577 : vector<8x32xf32>
    %587 = math.exp %586 : vector<8x32xf32>
    %cst_150 = arith.constant 1.000000e+00 : f32
    %588 = vector.broadcast %cst_150 : f32 to vector<8x32xf32>
    %589 = arith.addf %588, %587 : vector<8x32xf32>
    %590 = arith.divf %588, %589 : vector<8x32xf32>
    %591 = math.tanh %579 : vector<8x32xf32>
    %592 = arith.mulf %590, %591 : vector<8x32xf32>
    %593 = arith.addf %585, %592 : vector<8x32xf32>
    %594 = arith.negf %578 : vector<8x32xf32>
    %595 = math.exp %594 : vector<8x32xf32>
    %cst_151 = arith.constant 1.000000e+00 : f32
    %596 = vector.broadcast %cst_151 : f32 to vector<8x32xf32>
    %597 = arith.addf %596, %595 : vector<8x32xf32>
    %598 = arith.divf %596, %597 : vector<8x32xf32>
    %599 = math.tanh %593 : vector<8x32xf32>
    %600 = arith.mulf %598, %599 : vector<8x32xf32>
    %c7_i32_152 = arith.constant 7 : i32
    %601 = vector.broadcast %c7_i32_152 : i32 to vector<8x1xi32>
    %602 = arith.cmpi sgt, %0, %601 : vector<8x1xi32>
    %603 = vector.shape_cast %602 : vector<8x1xi1> to vector<8x1xi1>
    %604 = vector.broadcast %603 : vector<8x1xi1> to vector<8x32xi1>
    %605 = arith.select %604, %600, %568 : vector<8x32xi1>, vector<8x32xf32>
    %c56_153 = arith.constant 56 : index
    %c0_154 = arith.constant 0 : index
    %606 = vector.load %arg12[%c56_153, %c0_154] : memref<64x32xf32, #tpu.memory_space<vmem>>, vector<8x32xf32>
    tpu.vector_store %arg12[%c56_153, %c0_154], %605 {strides = array<i32>} : memref<64x32xf32, #tpu.memory_space<vmem>>, vector<8x32xf32>,
    %c0_155 = arith.constant 0 : index
    %c0_156 = arith.constant 0 : index
    %607 = vector.load %arg12[%c0_155, %c0_156] : memref<64x32xf32, #tpu.memory_space<vmem>>, vector<64x32xf32>
    %c0_157 = arith.constant 0 : index
    %c0_158 = arith.constant 0 : index
    %608 = vector.load %arg8[%c0_157, %c0_158] : memref<32x128xf32, #tpu.memory_space<vmem>>, vector<32x128xf32>
    %cst_159 = arith.constant dense<0.000000e+00> : vector<64x128xf32>
    %609 = tpu.matmul %607, %608, %cst_159 {dimension_numbers = #tpu.dot_dimension_numbers<[1], [0], [0], [1], [0, 0, 1, 1], [], []>} : vector<64x32xf32>, vector<32x128xf32>, vector<64x128xf32> -> vector<64x128xf32>
    %c0_160 = arith.constant 0 : index
    %c0_161 = arith.constant 0 : index
    %610 = vector.load %arg9[%c0_160, %c0_161] : memref<1x128xf32, #tpu.memory_space<vmem>>, vector<1x128xf32>
    %611 = vector.broadcast %610 : vector<1x128xf32> to vector<64x128xf32>
    %612 = arith.addf %609, %611 : vector<64x128xf32>
    %c0_162 = arith.constant 0 : index
    %c0_163 = arith.constant 0 : index
    %613 = vector.load %arg10[%c0_162, %c0_163] : memref<64x128xf32, #tpu.memory_space<vmem>>, vector<64x128xf32>
    tpu.vector_store %arg10[%c0_162, %c0_163], %612 {strides = array<i32>} : memref<64x128xf32, #tpu.memory_space<vmem>>, vector<64x128xf32>,
    return
  }
}

</mosaic_0001>

<llo_original>
// kernel: proposal_model_forward.1
$region0: #{proposal_model_forward.1}
  #allocation0 [shape = 'u32[]', space=smem, size = 0x4, offset = 0x4, fixed_abs, tag = 'smem constant byte address 0x4 - core index']
  #allocation1 [shape = 'u32[72,128]{1,0:T(1,128)}', space=vmem, size = 0x9000, scoped, tag = 'internal scratch']
  #allocation2 [shape = 'f32[64,128]{1,0:T(8,128)}', space=vmem, size = 0x8000, scoped, tag = 'scratch operand']
  #allocation3 [shape = 'f32[64,32]{1,0:T(8,128)}', space=vmem, size = 0x8000, scoped, tag = 'scratch operand']
  %s0 = inlined_call_operand.vmem [shape: f32[64,32], index: 0, kind: input, shape index: {}]
  %s1 = inlined_call_operand.vmem [shape: s32[8,1], index: 1, kind: input, shape index: {}]
  %s2 = inlined_call_operand.vmem [shape: f32[32,128], index: 2, kind: input, shape index: {}]
  %s3 = inlined_call_operand.vmem [shape: f32[32,128], index: 3, kind: input, shape index: {}]
  %s4 = inlined_call_operand.vmem [shape: f32[1,128], index: 4, kind: input, shape index: {}]
  %s5 = inlined_call_operand.vmem [shape: f32[32,128], index: 5, kind: input, shape index: {}]
  %s6 = inlined_call_operand.vmem [shape: f32[32,128], index: 6, kind: input, shape index: {}]
  %s7 = inlined_call_operand.vmem [shape: f32[1,128], index: 7, kind: input, shape index: {}]
  %s8 = inlined_call_operand.vmem [shape: f32[32,128], index: 8, kind: input, shape index: {}]
  %s9 = inlined_call_operand.vmem [shape: f32[1,128], index: 9, kind: input, shape index: {}]
  %s10 = inlined_call_operand.vmem [shape: f32[64,128], index: 10, kind: output, shape index: {}]
  %s11 = sld [smem:[#allocation0]]
  $region50: #{proposal_model_forward.1} parent=0
    _
  %s13 = ssub.s32 1, %s11
  %s14 = scalar_select 0, %s13, %s11
  // Predicated region
  $region2: #{proposal_model_forward.1} parent=0 // pred_check
    _
  $region3: #{proposal_model_forward.1} parent=0 // pred_check_branch
    %16 = sbr.rel (0) target = $region5
  $region4: #{proposal_model_forward.1} parent=0 // pred_region
    _
  $region5: #{proposal_model_forward.1} parent=0 // pred_fallthru
    _
  // Predicated region
  $region6: #{proposal_model_forward.1} parent=0 // pred_check
    _
  $region7: #{proposal_model_forward.1} parent=0 // pred_check_branch
    %18 = sbr.rel (0) target = $region9
  $region8: #{proposal_model_forward.1} parent=0 // pred_region
    _
  $region9: #{proposal_model_forward.1} parent=0 // pred_fallthru
    _
  // Predicated region
  $region10: #{proposal_model_forward.1} parent=0 // pred_check
    _
  $region11: #{proposal_model_forward.1} parent=0 // pred_check_branch
    %20 = sbr.rel (0) target = $region13
  $region12: #{proposal_model_forward.1} parent=0 // pred_region
    _
  $region13: #{proposal_model_forward.1} parent=0 // pred_fallthru
    _
  // Predicated region
  $region14: #{proposal_model_forward.1} parent=0 // pred_check
    _
  $region15: #{proposal_model_forward.1} parent=0 // pred_check_branch
    %22 = sbr.rel (0) target = $region17
  $region16: #{proposal_model_forward.1} parent=0 // pred_region
    _
  $region17: #{proposal_model_forward.1} parent=0 // pred_fallthru
    _
  // Predicated region
  $region18: #{proposal_model_forward.1} parent=0 // pred_check
    _
  $region19: #{proposal_model_forward.1} parent=0 // pred_check_branch
    %24 = sbr.rel (0) target = $region21
  $region20: #{proposal_model_forward.1} parent=0 // pred_region
    _
  $region21: #{proposal_model_forward.1} parent=0 // pred_fallthru
    _
  // Predicated region
  $region22: #{proposal_model_forward.1} parent=0 // pred_check
    _
  $region23: #{proposal_model_forward.1} parent=0 // pred_check_branch
    %26 = sbr.rel (0) target = $region25
  $region24: #{proposal_model_forward.1} parent=0 // pred_region
    _
  $region25: #{proposal_model_forward.1} parent=0 // pred_fallthru
    _
  // Predicated region
  $region26: #{proposal_model_forward.1} parent=0 // pred_check
    _
  $region27: #{proposal_model_forward.1} parent=0 // pred_check_branch
    %28 = sbr.rel (0) target = $region29
  $region28: #{proposal_model_forward.1} parent=0 // pred_region
    _
  $region29: #{proposal_model_forward.1} parent=0 // pred_fallthru
    _
  // Predicated region
  $region30: #{proposal_model_forward.1} parent=0 // pred_check
    _
  $region31: #{proposal_model_forward.1} parent=0 // pred_check_branch
    %30 = sbr.rel (0) target = $region33
  $region32: #{proposal_model_forward.1} parent=0 // pred_region
    _
  $region33: #{proposal_model_forward.1} parent=0 // pred_fallthru
    _
  // Predicated region
  $region34: #{proposal_model_forward.1} parent=0 // pred_check
    _
  $region35: #{proposal_model_forward.1} parent=0 // pred_check_branch
    %32 = sbr.rel (0) target = $region37
  $region36: #{proposal_model_forward.1} parent=0 // pred_region
    _
  $region37: #{proposal_model_forward.1} parent=0 // pred_fallthru
    _
  // Predicated region
  $region38: #{proposal_model_forward.1} parent=0 // pred_check
    _
  $region39: #{proposal_model_forward.1} parent=0 // pred_check_branch
    %34 = sbr.rel (0) target = $region41
  $region40: #{proposal_model_forward.1} parent=0 // pred_region
    _
  $region41: #{proposal_model_forward.1} parent=0 // pred_fallthru
    _
  %v35 = vld [vmem:[%s1] sm:$0xff]
  %v36 = vld [vmem:[%s2] sm:$0xff]
  %v37 = vld [vmem:[%s2 + $0x8] sm:$0xff]
  %v38 = vld [vmem:[%s2 + $0x10] sm:$0xff]
  %v39 = vld [vmem:[%s2 + $0x18] sm:$0xff]
  %v40 = vld [vmem:[%s3] sm:$0xff]
  %v41 = vld [vmem:[%s3 + $0x8] sm:$0xff]
  %v42 = vld [vmem:[%s3 + $0x10] sm:$0xff]
  %v43 = vld [vmem:[%s3 + $0x18] sm:$0xff]
  %v44 = vld [vmem:[%s4] sm:$0x1]
  %v45 = vld [vmem:[%s0] sm:$0xff]
  %v46 = vld [vmem:[%s0 + $0x8] sm:$0xff]
  %v47 = vld [vmem:[%s0 + $0x10] sm:$0xff]
  %v48 = vld [vmem:[%s0 + $0x18] sm:$0xff]
  %v49 = vld [vmem:[%s0 + $0x20] sm:$0xff]
  %v50 = vld [vmem:[%s0 + $0x28] sm:$0xff]
  %v51 = vld [vmem:[%s0 + $0x30] sm:$0xff]
  %v52 = vld [vmem:[%s0 + $0x38] sm:$0xff]
  %v54 = vperm.slane %v44, 0
  %vm56 = vcmask 261120
  %v58 = vsel %vm56, %v45, 0
  %v61 = vsel %vm56, %v46, 0
  %v64 = vsel %vm56, %v47, 0
  %v67 = vsel %vm56, %v48, 0
  %v70 = vsel %vm56, %v49, 0
  %v73 = vsel %vm56, %v50, 0
  %v76 = vsel %vm56, %v51, 0
  %v79 = vsel %vm56, %v52, 0
  %81 = vmatpush.msra.mxu0 0.0
  %82 = vmatpush.msra.mxu0 0.0
  %83 = vmatpush.msra.mxu0 0.0
  %84 = vmatpush.msra.mxu0 0.0
  %85 = vmatpush.msra.mxu0 0.0
  %86 = vmatpush.msra.mxu0 0.0
  %87 = vmatpush.msra.mxu0 0.0
  %88 = vmatpush.msra.mxu0 0.0
  %89 = vmatpush.msra.mxu0 0.0
  %90 = vmatpush.msra.mxu0 0.0
  %91 = vmatpush.msra.mxu0 0.0
  %92 = vmatpush.msra.mxu0 0.0
  %93 = vmatpush.msra.mxu0 %v39
  %94 = vmatpush.msra.mxu0 %v38
  %95 = vmatpush.msra.mxu0 %v37
  %96 = vmatpush.msra.mxu0 %v36
  %97 = vmatmul.f32.gmra.mxu0 %v58
  %v98 = vpop.f32.mrf.mxu0
  %v99 = vadd.f32 %v54, %v98
  %100 = vmatmul.f32.gmra.mxu0 %v61
  %v101 = vpop.f32.mrf.mxu0
  %v102 = vadd.f32 %v54, %v101
  %103 = vmatmul.f32.gmra.mxu0 %v64
  %v104 = vpop.f32.mrf.mxu0
  %v105 = vadd.f32 %v54, %v104
  %106 = vmatmul.f32.gmra.mxu0 %v67
  %v107 = vpop.f32.mrf.mxu0
  %v108 = vadd.f32 %v54, %v107
  %109 = vmatmul.f32.gmra.mxu0 %v70
  %v110 = vpop.f32.mrf.mxu0
  %v111 = vadd.f32 %v54, %v110
  %112 = vmatmul.f32.gmra.mxu0 %v73
  %v113 = vpop.f32.mrf.mxu0
  %v114 = vadd.f32 %v54, %v113
  %115 = vmatmul.f32.gmra.mxu0 %v76
  %v116 = vpop.f32.mrf.mxu0
  %v117 = vadd.f32 %v54, %v116
  %118 = vmatmul.f32.gmra.mxu0 %v79
  %v119 = vpop.f32.mrf.mxu0
  %v120 = vadd.f32 %v54, %v119
  %121 = vdwg.mxu0
  %122 = vst [vmem:[#allocation2] sm:$0xff] %v99
  %123 = vst [vmem:[#allocation2 + $0x8] sm:$0xff] %v102
  %124 = vst [vmem:[#allocation2 + $0x10] sm:$0xff] %v105
  %125 = vst [vmem:[#allocation2 + $0x18] sm:$0xff] %v108
  %126 = vst [vmem:[#allocation2 + $0x20] sm:$0xff] %v111
  %127 = vst [vmem:[#allocation2 + $0x28] sm:$0xff] %v114
  %128 = vst [vmem:[#allocation2 + $0x30] sm:$0xff] %v117
  %129 = vst [vmem:[#allocation2 + $0x38] sm:$0xff] %v120
  %v130 = vld [vmem:[#allocation2] sm:$0xff]
  %v132 = vsel %vm56, 0.0, 0
  %134 = vmatpush.msra.mxu0 0.0
  %135 = vmatpush.msra.mxu0 0.0
  %136 = vmatpush.msra.mxu0 0.0
  %137 = vmatpush.msra.mxu0 0.0
  %138 = vmatpush.msra.mxu0 0.0
  %139 = vmatpush.msra.mxu0 0.0
  %140 = vmatpush.msra.mxu0 0.0
  %141 = vmatpush.msra.mxu0 0.0
  %142 = vmatpush.msra.mxu0 0.0
  %143 = vmatpush.msra.mxu0 0.0
  %144 = vmatpush.msra.mxu0 0.0
  %145 = vmatpush.msra.mxu0 0.0
  %146 = vmatpush.msra.mxu0 %v43
  %147 = vmatpush.msra.mxu0 %v42
  %148 = vmatpush.msra.mxu0 %v41
  %149 = vmatpush.msra.mxu0 %v40
  %150 = vmatmul.f32.gmra.mxu0 %v132
  %v151 = vpop.f32.mrf.mxu0
  %v152 = vadd.f32 0.0, %v151
  %153 = vdwg.mxu0
  %v154 = vadd.f32 %v130, %v152
  %v155 = vxor.u32 %v154, 2147483648
  %v156 = vmul.f32 %v155, 1.442695
  %v157 = vpow.pop %v156
  %v158 = vadd.f32 %v157, 1.0
  %v159 = vrcp.pop %v158
  %v160 = vmul.f32 %v158, %v159
  %v161 = vsub.f32 1.0, %v160
  %v162 = vmul.f32 %v159, %v161
  %v163 = vadd.f32 %v159, %v162
  %vm164 = vweird.f32 %v158
  %vm165 = vweird.f32 %v159
  %vm166 = vmor %vm164, %vm165
  %v167 = vsel %vm166, %v159, %v163
  %v168 = vand.u32 2147483647, %v158
  %vm169 = vcmp.eq.f32.partialorder %v168, 8.507059e+37
  %v170 = vand.u32 %v158, 2147483648
  %v171 = vor.u32 1.1754944e-38, %v170
  %v172 = vsel %vm169, %v171, %v167
  %v173 = vmul.f32 1.0, %v172
  %v174 = vmul.f32 %v173, 0.0
  %v175 = vtanh.pop %v154
  %177 = vrot.lane.b32.xlu0 %v175, 64
  %v178 = vpop.permute.xlu0 %177
  %v180 = vmul.f32 %v173, %v178
  %182 = vrot.lane.b32.xlu0 %v180, 96
  %v183 = vpop.permute.xlu0 %182
  %v185 = vadd.f32 %v174, %v183
  %v186 = vtanh.pop %v185
  %188 = vrot.lane.b32.xlu0 %v186, 64
  %v189 = vpop.permute.xlu0 %188
  %v191 = vmul.f32 %v173, %v189
  %vm192 = vcmp.gt.s32.totalorder %v35, 0
  %v193 = vsel %vm192, 1, 0
  %194 = vset.pattern.permute.xlu0 0
  %195 = vperm.xlu0 %194, %v193
  %v196 = vpop.permute.xlu0 %195
  %vm197 = vcmp.eq.s32.totalorder %v196, 1
  %v198 = vsel %vm197, %v191, 0.0
  %v199 = vsel %vm197, %v185, 0.0
  %201 = vrot.lane.b32.xlu0 %v198, 64
  %v202 = vpop.permute.xlu0 %201
  %204 = vst.msk [vmem:[#allocation3] sm:$0xff] %vm56, %v202
  %v205 = vld [vmem:[#allocation2 + $0x8] sm:$0xff]
  %v206 = vsel %vm56, %v202, 0
  %208 = vmatpush.msra.mxu0 0.0
  %209 = vmatpush.msra.mxu0 0.0
  %210 = vmatpush.msra.mxu0 0.0
  %211 = vmatpush.msra.mxu0 0.0
  %212 = vmatpush.msra.mxu0 0.0
  %213 = vmatpush.msra.mxu0 0.0
  %214 = vmatpush.msra.mxu0 0.0
  %215 = vmatpush.msra.mxu0 0.0
  %216 = vmatpush.msra.mxu0 0.0
  %217 = vmatpush.msra.mxu0 0.0
  %218 = vmatpush.msra.mxu0 0.0
  %219 = vmatpush.msra.mxu0 0.0
  %220 = vmatpush.msra.mxu0 %v43
  %221 = vmatpush.msra.mxu0 %v42
  %222 = vmatpush.msra.mxu0 %v41
  %223 = vmatpush.msra.mxu0 %v40
  %224 = vmatmul.f32.gmra.mxu0 %v206
  %v225 = vpop.f32.mrf.mxu0
  %v226 = vadd.f32 0.0, %v225
  %227 = vdwg.mxu0
  %v228 = vadd.f32 %v205, %v226
  %v229 = vxor.u32 %v228, 2147483648
  %v230 = vmul.f32 %v229, 1.442695
  %v231 = vpow.pop %v230
  %v232 = vadd.f32 %v231, 1.0
  %v233 = vrcp.pop %v232
  %v234 = vmul.f32 %v232, %v233
  %v235 = vsub.f32 1.0, %v234
  %v236 = vmul.f32 %v233, %v235
  %v237 = vadd.f32 %v233, %v236
  %vm238 = vweird.f32 %v232
  %vm239 = vweird.f32 %v233
  %vm240 = vmor %vm238, %vm239
  %v241 = vsel %vm240, %v233, %v237
  %v242 = vand.u32 2147483647, %v232
  %vm243 = vcmp.eq.f32.partialorder %v242, 8.507059e+37
  %v244 = vand.u32 %v232, 2147483648
  %v245 = vor.u32 1.1754944e-38, %v244
  %v246 = vsel %vm243, %v245, %v241
  %v247 = vmul.f32 1.0, %v246
  %v248 = vmul.f32 %v247, %v199
  %v249 = vtanh.pop %v228
  %251 = vrot.lane.b32.xlu0 %v249, 64
  %v252 = vpop.permute.xlu0 %251
  %v254 = vmul.f32 %v247, %v252
  %256 = vrot.lane.b32.xlu0 %v254, 96
  %v257 = vpop.permute.xlu0 %256
  %v259 = vadd.f32 %v248, %v257
  %v260 = vtanh.pop %v259
  %262 = vrot.lane.b32.xlu0 %v260, 64
  %v263 = vpop.permute.xlu0 %262
  %v265 = vmul.f32 %v247, %v263
  %vm266 = vcmp.gt.s32.totalorder %v35, 1
  %v267 = vsel %vm266, 1, 0
  %268 = vset.pattern.permute.xlu0 0
  %269 = vperm.xlu0 %268, %v267
  %v270 = vpop.permute.xlu0 %269
  %vm271 = vcmp.eq.s32.totalorder %v270, 1
  %v272 = vsel %vm271, %v265, %v198
  %v273 = vsel %vm271, %v259, %v199
  %275 = vrot.lane.b32.xlu0 %v272, 64
  %v276 = vpop.permute.xlu0 %275
  %278 = vst.msk [vmem:[#allocation3 + $0x8] sm:$0xff] %vm56, %v276
  %v279 = vld [vmem:[#allocation2 + $0x10] sm:$0xff]
  %v280 = vsel %vm56, %v276, 0
  %282 = vmatpush.msra.mxu0 0.0
  %283 = vmatpush.msra.mxu0 0.0
  %284 = vmatpush.msra.mxu0 0.0
  %285 = vmatpush.msra.mxu0 0.0
  %286 = vmatpush.msra.mxu0 0.0
  %287 = vmatpush.msra.mxu0 0.0
  %288 = vmatpush.msra.mxu0 0.0
  %289 = vmatpush.msra.mxu0 0.0
  %290 = vmatpush.msra.mxu0 0.0
  %291 = vmatpush.msra.mxu0 0.0
  %292 = vmatpush.msra.mxu0 0.0
  %293 = vmatpush.msra.mxu0 0.0
  %294 = vmatpush.msra.mxu0 %v43
  %295 = vmatpush.msra.mxu0 %v42
  %296 = vmatpush.msra.mxu0 %v41
  %297 = vmatpush.msra.mxu0 %v40
  %298 = vmatmul.f32.gmra.mxu0 %v280
  %v299 = vpop.f32.mrf.mxu0
  %v300 = vadd.f32 0.0, %v299
  %301 = vdwg.mxu0
  %v302 = vadd.f32 %v279, %v300
  %v303 = vxor.u32 %v302, 2147483648
  %v304 = vmul.f32 %v303, 1.442695
  %v305 = vpow.pop %v304
  %v306 = vadd.f32 %v305, 1.0
  %v307 = vrcp.pop %v306
  %v308 = vmul.f32 %v306, %v307
  %v309 = vsub.f32 1.0, %v308
  %v310 = vmul.f32 %v307, %v309
  %v311 = vadd.f32 %v307, %v310
  %vm312 = vweird.f32 %v306
  %vm313 = vweird.f32 %v307
  %vm314 = vmor %vm312, %vm313
  %v315 = vsel %vm314, %v307, %v311
  %v316 = vand.u32 2147483647, %v306
  %vm317 = vcmp.eq.f32.partialorder %v316, 8.507059e+37
  %v318 = vand.u32 %v306, 2147483648
  %v319 = vor.u32 1.1754944e-38, %v318
  %v320 = vsel %vm317, %v319, %v315
  %v321 = vmul.f32 1.0, %v320
  %v322 = vmul.f32 %v321, %v273
  %v323 = vtanh.pop %v302
  %325 = vrot.lane.b32.xlu0 %v323, 64
  %v326 = vpop.permute.xlu0 %325
  %v328 = vmul.f32 %v321, %v326
  %330 = vrot.lane.b32.xlu0 %v328, 96
  %v331 = vpop.permute.xlu0 %330
  %v333 = vadd.f32 %v322, %v331
  %v334 = vtanh.pop %v333
  %336 = vrot.lane.b32.xlu0 %v334, 64
  %v337 = vpop.permute.xlu0 %336
  %v339 = vmul.f32 %v321, %v337
  %vm340 = vcmp.gt.s32.totalorder %v35, 2
  %v341 = vsel %vm340, 1, 0
  %342 = vset.pattern.permute.xlu0 0
  %343 = vperm.xlu0 %342, %v341
  %v344 = vpop.permute.xlu0 %343
  %vm345 = vcmp.eq.s32.totalorder %v344, 1
  %v346 = vsel %vm345, %v339, %v272
  %v347 = vsel %vm345, %v333, %v273
  %349 = vrot.lane.b32.xlu0 %v346, 64
  %v350 = vpop.permute.xlu0 %349
  %352 = vst.msk [vmem:[#allocation3 + $0x10] sm:$0xff] %vm56, %v350
  %v353 = vld [vmem:[#allocation2 + $0x18] sm:$0xff]
  %v354 = vsel %vm56, %v350, 0
  %356 = vmatpush.msra.mxu0 0.0
  %357 = vmatpush.msra.mxu0 0.0
  %358 = vmatpush.msra.mxu0 0.0
  %359 = vmatpush.msra.mxu0 0.0
  %360 = vmatpush.msra.mxu0 0.0
  %361 = vmatpush.msra.mxu0 0.0
  %362 = vmatpush.msra.mxu0 0.0
  %363 = vmatpush.msra.mxu0 0.0
  %364 = vmatpush.msra.mxu0 0.0
  %365 = vmatpush.msra.mxu0 0.0
  %366 = vmatpush.msra.mxu0 0.0
  %367 = vmatpush.msra.mxu0 0.0
  %368 = vmatpush.msra.mxu0 %v43
  %369 = vmatpush.msra.mxu0 %v42
  %370 = vmatpush.msra.mxu0 %v41
  %371 = vmatpush.msra.mxu0 %v40
  %372 = vmatmul.f32.gmra.mxu0 %v354
  %v373 = vpop.f32.mrf.mxu0
  %v374 = vadd.f32 0.0, %v373
  %375 = vdwg.mxu0
  %v376 = vadd.f32 %v353, %v374
  %v377 = vxor.u32 %v376, 2147483648
  %v378 = vmul.f32 %v377, 1.442695
  %v379 = vpow.pop %v378
  %v380 = vadd.f32 %v379, 1.0
  %v381 = vrcp.pop %v380
  %v382 = vmul.f32 %v380, %v381
  %v383 = vsub.f32 1.0, %v382
  %v384 = vmul.f32 %v381, %v383
  %v385 = vadd.f32 %v381, %v384
  %vm386 = vweird.f32 %v380
  %vm387 = vweird.f32 %v381
  %vm388 = vmor %vm386, %vm387
  %v389 = vsel %vm388, %v381, %v385
  %v390 = vand.u32 2147483647, %v380
  %vm391 = vcmp.eq.f32.partialorder %v390, 8.507059e+37
  %v392 = vand.u32 %v380, 2147483648
  %v393 = vor.u32 1.1754944e-38, %v392
  %v394 = vsel %vm391, %v393, %v389
  %v395 = vmul.f32 1.0, %v394
  %v396 = vmul.f32 %v395, %v347
  %v397 = vtanh.pop %v376
  %399 = vrot.lane.b32.xlu0 %v397, 64
  %v400 = vpop.permute.xlu0 %399
  %v402 = vmul.f32 %v395, %v400
  %404 = vrot.lane.b32.xlu0 %v402, 96
  %v405 = vpop.permute.xlu0 %404
  %v407 = vadd.f32 %v396, %v405
  %v408 = vtanh.pop %v407
  %410 = vrot.lane.b32.xlu0 %v408, 64
  %v411 = vpop.permute.xlu0 %410
  %v413 = vmul.f32 %v395, %v411
  %vm414 = vcmp.gt.s32.totalorder %v35, 3
  %v415 = vsel %vm414, 1, 0
  %416 = vset.pattern.permute.xlu0 0
  %417 = vperm.xlu0 %416, %v415
  %v418 = vpop.permute.xlu0 %417
  %vm419 = vcmp.eq.s32.totalorder %v418, 1
  %v420 = vsel %vm419, %v413, %v346
  %v421 = vsel %vm419, %v407, %v347
  %423 = vrot.lane.b32.xlu0 %v420, 64
  %v424 = vpop.permute.xlu0 %423
  %426 = vst.msk [vmem:[#allocation3 + $0x18] sm:$0xff] %vm56, %v424
  %v427 = vld [vmem:[#allocation2 + $0x20] sm:$0xff]
  %v428 = vsel %vm56, %v424, 0
  %430 = vmatpush.msra.mxu0 0.0
  %431 = vmatpush.msra.mxu0 0.0
  %432 = vmatpush.msra.mxu0 0.0
  %433 = vmatpush.msra.mxu0 0.0
  %434 = vmatpush.msra.mxu0 0.0
  %435 = vmatpush.msra.mxu0 0.0
  %436 = vmatpush.msra.mxu0 0.0
  %437 = vmatpush.msra.mxu0 0.0
  %438 = vmatpush.msra.mxu0 0.0
  %439 = vmatpush.msra.mxu0 0.0
  %440 = vmatpush.msra.mxu0 0.0
  %441 = vmatpush.msra.mxu0 0.0
  %442 = vmatpush.msra.mxu0 %v43
  %443 = vmatpush.msra.mxu0 %v42
  %444 = vmatpush.msra.mxu0 %v41
  %445 = vmatpush.msra.mxu0 %v40
  %446 = vmatmul.f32.gmra.mxu0 %v428
  %v447 = vpop.f32.mrf.mxu0
  %v448 = vadd.f32 0.0, %v447
  %449 = vdwg.mxu0
  %v450 = vadd.f32 %v427, %v448
  %v451 = vxor.u32 %v450, 2147483648
  %v452 = vmul.f32 %v451, 1.442695
  %v453 = vpow.pop %v452
  %v454 = vadd.f32 %v453, 1.0
  %v455 = vrcp.pop %v454
  %v456 = vmul.f32 %v454, %v455
  %v457 = vsub.f32 1.0, %v456
  %v458 = vmul.f32 %v455, %v457
  %v459 = vadd.f32 %v455, %v458
  %vm460 = vweird.f32 %v454
  %vm461 = vweird.f32 %v455
  %vm462 = vmor %vm460, %vm461
  %v463 = vsel %vm462, %v455, %v459
  %v464 = vand.u32 2147483647, %v454
  %vm465 = vcmp.eq.f32.partialorder %v464, 8.507059e+37
  %v466 = vand.u32 %v454, 2147483648
  %v467 = vor.u32 1.1754944e-38, %v466
  %v468 = vsel %vm465, %v467, %v463
  %v469 = vmul.f32 1.0, %v468
  %v470 = vmul.f32 %v469, %v421
  %v471 = vtanh.pop %v450
  %473 = vrot.lane.b32.xlu0 %v471, 64
  %v474 = vpop.permute.xlu0 %473
  %v476 = vmul.f32 %v469, %v474
  %478 = vrot.lane.b32.xlu0 %v476, 96
  %v479 = vpop.permute.xlu0 %478
  %v481 = vadd.f32 %v470, %v479
  %v482 = vtanh.pop %v481
  %484 = vrot.lane.b32.xlu0 %v482, 64
  %v485 = vpop.permute.xlu0 %484
  %v487 = vmul.f32 %v469, %v485
  %vm488 = vcmp.gt.s32.totalorder %v35, 4
  %v489 = vsel %vm488, 1, 0
  %490 = vset.pattern.permute.xlu0 0
  %491 = vperm.xlu0 %490, %v489
  %v492 = vpop.permute.xlu0 %491
  %vm493 = vcmp.eq.s32.totalorder %v492, 1
  %v494 = vsel %vm493, %v487, %v420
  %v495 = vsel %vm493, %v481, %v421
  %497 = vrot.lane.b32.xlu0 %v494, 64
  %v498 = vpop.permute.xlu0 %497
  %500 = vst.msk [vmem:[#allocation3 + $0x20] sm:$0xff] %vm56, %v498
  %v501 = vld [vmem:[#allocation2 + $0x28] sm:$0xff]
  %v502 = vsel %vm56, %v498, 0
  %504 = vmatpush.msra.mxu0 0.0
  %505 = vmatpush.msra.mxu0 0.0
  %506 = vmatpush.msra.mxu0 0.0
  %507 = vmatpush.msra.mxu0 0.0
  %508 = vmatpush.msra.mxu0 0.0
  %509 = vmatpush.msra.mxu0 0.0
  %510 = vmatpush.msra.mxu0 0.0
  %511 = vmatpush.msra.mxu0 0.0
  %512 = vmatpush.msra.mxu0 0.0
  %513 = vmatpush.msra.mxu0 0.0
  %514 = vmatpush.msra.mxu0 0.0
  %515 = vmatpush.msra.mxu0 0.0
  %516 = vmatpush.msra.mxu0 %v43
  %517 = vmatpush.msra.mxu0 %v42
  %518 = vmatpush.msra.mxu0 %v41
  %519 = vmatpush.msra.mxu0 %v40
  %520 = vmatmul.f32.gmra.mxu0 %v502
  %v521 = vpop.f32.mrf.mxu0
  %v522 = vadd.f32 0.0, %v521
  %523 = vdwg.mxu0
  %v524 = vadd.f32 %v501, %v522
  %v525 = vxor.u32 %v524, 2147483648
  %v526 = vmul.f32 %v525, 1.442695
  %v527 = vpow.pop %v526
  %v528 = vadd.f32 %v527, 1.0
  %v529 = vrcp.pop %v528
  %v530 = vmul.f32 %v528, %v529
  %v531 = vsub.f32 1.0, %v530
  %v532 = vmul.f32 %v529, %v531
  %v533 = vadd.f32 %v529, %v532
  %vm534 = vweird.f32 %v528
  %vm535 = vweird.f32 %v529
  %vm536 = vmor %vm534, %vm535
  %v537 = vsel %vm536, %v529, %v533
  %v538 = vand.u32 2147483647, %v528
  %vm539 = vcmp.eq.f32.partialorder %v538, 8.507059e+37
  %v540 = vand.u32 %v528, 2147483648
  %v541 = vor.u32 1.1754944e-38, %v540
  %v542 = vsel %vm539, %v541, %v537
  %v543 = vmul.f32 1.0, %v542
  %v544 = vmul.f32 %v543, %v495
  %v545 = vtanh.pop %v524
  %547 = vrot.lane.b32.xlu0 %v545, 64
  %v548 = vpop.permute.xlu0 %547
  %v550 = vmul.f32 %v543, %v548
  %552 = vrot.lane.b32.xlu0 %v550, 96
  %v553 = vpop.permute.xlu0 %552
  %v555 = vadd.f32 %v544, %v553
  %v556 = vtanh.pop %v555
  %558 = vrot.lane.b32.xlu0 %v556, 64
  %v559 = vpop.permute.xlu0 %558
  %v561 = vmul.f32 %v543, %v559
  %vm562 = vcmp.gt.s32.totalorder %v35, 5
  %v563 = vsel %vm562, 1, 0
  %564 = vset.pattern.permute.xlu0 0
  %565 = vperm.xlu0 %564, %v563
  %v566 = vpop.permute.xlu0 %565
  %vm567 = vcmp.eq.s32.totalorder %v566, 1
  %v568 = vsel %vm567, %v561, %v494
  %v569 = vsel %vm567, %v555, %v495
  %571 = vrot.lane.b32.xlu0 %v568, 64
  %v572 = vpop.permute.xlu0 %571
  %574 = vst.msk [vmem:[#allocation3 + $0x28] sm:$0xff] %vm56, %v572
  %v575 = vld [vmem:[#allocation2 + $0x30] sm:$0xff]
  %v576 = vsel %vm56, %v572, 0
  %578 = vmatpush.msra.mxu0 0.0
  %579 = vmatpush.msra.mxu0 0.0
  %580 = vmatpush.msra.mxu0 0.0
  %581 = vmatpush.msra.mxu0 0.0
  %582 = vmatpush.msra.mxu0 0.0
  %583 = vmatpush.msra.mxu0 0.0
  %584 = vmatpush.msra.mxu0 0.0
  %585 = vmatpush.msra.mxu0 0.0
  %586 = vmatpush.msra.mxu0 0.0
  %587 = vmatpush.msra.mxu0 0.0
  %588 = vmatpush.msra.mxu0 0.0
  %589 = vmatpush.msra.mxu0 0.0
  %590 = vmatpush.msra.mxu0 %v43
  %591 = vmatpush.msra.mxu0 %v42
  %592 = vmatpush.msra.mxu0 %v41
  %593 = vmatpush.msra.mxu0 %v40
  %594 = vmatmul.f32.gmra.mxu0 %v576
  %v595 = vpop.f32.mrf.mxu0
  %v596 = vadd.f32 0.0, %v595
  %597 = vdwg.mxu0
  %v598 = vadd.f32 %v575, %v596
  %v599 = vxor.u32 %v598, 2147483648
  %v600 = vmul.f32 %v599, 1.442695
  %v601 = vpow.pop %v600
  %v602 = vadd.f32 %v601, 1.0
  %v603 = vrcp.pop %v602
  %v604 = vmul.f32 %v602, %v603
  %v605 = vsub.f32 1.0, %v604
  %v606 = vmul.f32 %v603, %v605
  %v607 = vadd.f32 %v603, %v606
  %vm608 = vweird.f32 %v602
  %vm609 = vweird.f32 %v603
  %vm610 = vmor %vm608, %vm609
  %v611 = vsel %vm610, %v603, %v607
  %v612 = vand.u32 2147483647, %v602
  %vm613 = vcmp.eq.f32.partialorder %v612, 8.507059e+37
  %v614 = vand.u32 %v602, 2147483648
  %v615 = vor.u32 1.1754944e-38, %v614
  %v616 = vsel %vm613, %v615, %v611
  %v617 = vmul.f32 1.0, %v616
  %v618 = vmul.f32 %v617, %v569
  %v619 = vtanh.pop %v598
  %621 = vrot.lane.b32.xlu0 %v619, 64
  %v622 = vpop.permute.xlu0 %621
  %v624 = vmul.f32 %v617, %v622
  %626 = vrot.lane.b32.xlu0 %v624, 96
  %v627 = vpop.permute.xlu0 %626
  %v629 = vadd.f32 %v618, %v627
  %v630 = vtanh.pop %v629
  %632 = vrot.lane.b32.xlu0 %v630, 64
  %v633 = vpop.permute.xlu0 %632
  %v635 = vmul.f32 %v617, %v633
  %vm636 = vcmp.gt.s32.totalorder %v35, 6
  %v637 = vsel %vm636, 1, 0
  %638 = vset.pattern.permute.xlu0 0
  %639 = vperm.xlu0 %638, %v637
  %v640 = vpop.permute.xlu0 %639
  %vm641 = vcmp.eq.s32.totalorder %v640, 1
  %v642 = vsel %vm641, %v635, %v568
  %v643 = vsel %vm641, %v629, %v569
  %645 = vrot.lane.b32.xlu0 %v642, 64
  %v646 = vpop.permute.xlu0 %645
  %648 = vst.msk [vmem:[#allocation3 + $0x30] sm:$0xff] %vm56, %v646
  %v649 = vld [vmem:[#allocation2 + $0x38] sm:$0xff]
  %v650 = vsel %vm56, %v646, 0
  %652 = vmatpush.msra.mxu0 0.0
  %653 = vmatpush.msra.mxu0 0.0
  %654 = vmatpush.msra.mxu0 0.0
  %655 = vmatpush.msra.mxu0 0.0
  %656 = vmatpush.msra.mxu0 0.0
  %657 = vmatpush.msra.mxu0 0.0
  %658 = vmatpush.msra.mxu0 0.0
  %659 = vmatpush.msra.mxu0 0.0
  %660 = vmatpush.msra.mxu0 0.0
  %661 = vmatpush.msra.mxu0 0.0
  %662 = vmatpush.msra.mxu0 0.0
  %663 = vmatpush.msra.mxu0 0.0
  %664 = vmatpush.msra.mxu0 %v43
  %665 = vmatpush.msra.mxu0 %v42
  %666 = vmatpush.msra.mxu0 %v41
  %667 = vmatpush.msra.mxu0 %v40
  %668 = vmatmul.f32.gmra.mxu0 %v650
  %v669 = vpop.f32.mrf.mxu0
  %v670 = vadd.f32 0.0, %v669
  %671 = vdwg.mxu0
  %v672 = vadd.f32 %v649, %v670
  %v673 = vxor.u32 %v672, 2147483648
  %v674 = vmul.f32 %v673, 1.442695
  %v675 = vpow.pop %v674
  %v676 = vadd.f32 %v675, 1.0
  %v677 = vrcp.pop %v676
  %v678 = vmul.f32 %v676, %v677
  %v679 = vsub.f32 1.0, %v678
  %v680 = vmul.f32 %v677, %v679
  %v681 = vadd.f32 %v677, %v680
  %vm682 = vweird.f32 %v676
  %vm683 = vweird.f32 %v677
  %vm684 = vmor %vm682, %vm683
  %v685 = vsel %vm684, %v677, %v681
  %v686 = vand.u32 2147483647, %v676
  %vm687 = vcmp.eq.f32.partialorder %v686, 8.507059e+37
  %v688 = vand.u32 %v676, 2147483648
  %v689 = vor.u32 1.1754944e-38, %v688
  %v690 = vsel %vm687, %v689, %v685
  %v691 = vmul.f32 1.0, %v690
  %v692 = vmul.f32 %v691, %v643
  %v693 = vtanh.pop %v672
  %695 = vrot.lane.b32.xlu0 %v693, 64
  %v696 = vpop.permute.xlu0 %695
  %v698 = vmul.f32 %v691, %v696
  %700 = vrot.lane.b32.xlu0 %v698, 96
  %v701 = vpop.permute.xlu0 %700
  %v703 = vadd.f32 %v692, %v701
  %v704 = vtanh.pop %v703
  %706 = vrot.lane.b32.xlu0 %v704, 64
  %v707 = vpop.permute.xlu0 %706
  %v709 = vmul.f32 %v691, %v707
  %vm710 = vcmp.gt.s32.totalorder %v35, 7
  %v711 = vsel %vm710, 1, 0
  %712 = vset.pattern.permute.xlu0 0
  %713 = vperm.xlu0 %712, %v711
  %v714 = vpop.permute.xlu0 %713
  %vm715 = vcmp.eq.s32.totalorder %v714, 1
  %v716 = vsel %vm715, %v709, %v642
  %718 = vrot.lane.b32.xlu0 %v716, 64
  %v719 = vpop.permute.xlu0 %718
  %721 = vst.msk [vmem:[#allocation3 + $0x38] sm:$0xff] %vm56, %v719
  %v722 = vld [vmem:[%s5] sm:$0xff]
  %v723 = vld [vmem:[%s5 + $0x8] sm:$0xff]
  %v724 = vld [vmem:[%s5 + $0x10] sm:$0xff]
  %v725 = vld [vmem:[%s5 + $0x18] sm:$0xff]
  %v726 = vld [vmem:[%s6] sm:$0xff]
  %v727 = vld [vmem:[%s6 + $0x8] sm:$0xff]
  %v728 = vld [vmem:[%s6 + $0x10] sm:$0xff]
  %v729 = vld [vmem:[%s6 + $0x18] sm:$0xff]
  %v730 = vld [vmem:[%s7] sm:$0x1]
  %v731 = vld [vmem:[#allocation3] sm:$0xff]
  %v732 = vld [vmem:[#allocation3 + $0x8] sm:$0xff]
  %v733 = vld [vmem:[#allocation3 + $0x10] sm:$0xff]
  %v734 = vld [vmem:[#allocation3 + $0x18] sm:$0xff]
  %v735 = vld [vmem:[#allocation3 + $0x20] sm:$0xff]
  %v736 = vld [vmem:[#allocation3 + $0x28] sm:$0xff]
  %v737 = vld [vmem:[#allocation3 + $0x30] sm:$0xff]
  %v738 = vld [vmem:[#allocation3 + $0x38] sm:$0xff]
  %v740 = vperm.slane %v730, 0
  %v743 = vsel %vm56, %v731, 0
  %v746 = vsel %vm56, %v732, 0
  %v749 = vsel %vm56, %v733, 0
  %v752 = vsel %vm56, %v734, 0
  %v755 = vsel %vm56, %v735, 0
  %v758 = vsel %vm56, %v736, 0
  %v761 = vsel %vm56, %v737, 0
  %v764 = vsel %vm56, %v738, 0
  %766 = vmatpush.msra.mxu0 0.0
  %767 = vmatpush.msra.mxu0 0.0
  %768 = vmatpush.msra.mxu0 0.0
  %769 = vmatpush.msra.mxu0 0.0
  %770 = vmatpush.msra.mxu0 0.0
  %771 = vmatpush.msra.mxu0 0.0
  %772 = vmatpush.msra.mxu0 0.0
  %773 = vmatpush.msra.mxu0 0.0
  %774 = vmatpush.msra.mxu0 0.0
  %775 = vmatpush.msra.mxu0 0.0
  %776 = vmatpush.msra.mxu0 0.0
  %777 = vmatpush.msra.mxu0 0.0
  %778 = vmatpush.msra.mxu0 %v725
  %779 = vmatpush.msra.mxu0 %v724
  %780 = vmatpush.msra.mxu0 %v723
  %781 = vmatpush.msra.mxu0 %v722
  %782 = vmatmul.f32.gmra.mxu0 %v743
  %v783 = vpop.f32.mrf.mxu0
  %v784 = vadd.f32 %v740, %v783
  %785 = vmatmul.f32.gmra.mxu0 %v746
  %v786 = vpop.f32.mrf.mxu0
  %v787 = vadd.f32 %v740, %v786
  %788 = vmatmul.f32.gmra.mxu0 %v749
  %v789 = vpop.f32.mrf.mxu0
  %v790 = vadd.f32 %v740, %v789
  %791 = vmatmul.f32.gmra.mxu0 %v752
  %v792 = vpop.f32.mrf.mxu0
  %v793 = vadd.f32 %v740, %v792
  %794 = vmatmul.f32.gmra.mxu0 %v755
  %v795 = vpop.f32.mrf.mxu0
  %v796 = vadd.f32 %v740, %v795
  %797 = vmatmul.f32.gmra.mxu0 %v758
  %v798 = vpop.f32.mrf.mxu0
  %v799 = vadd.f32 %v740, %v798
  %800 = vmatmul.f32.gmra.mxu0 %v761
  %v801 = vpop.f32.mrf.mxu0
  %v802 = vadd.f32 %v740, %v801
  %803 = vmatmul.f32.gmra.mxu0 %v764
  %v804 = vpop.f32.mrf.mxu0
  %v805 = vadd.f32 %v740, %v804
  %806 = vdwg.mxu0
  %807 = vst [vmem:[#allocation2] sm:$0xff] %v784
  %808 = vst [vmem:[#allocation2 + $0x8] sm:$0xff] %v787
  %809 = vst [vmem:[#allocation2 + $0x10] sm:$0xff] %v790
  %810 = vst [vmem:[#allocation2 + $0x18] sm:$0xff] %v793
  %811 = vst [vmem:[#allocation2 + $0x20] sm:$0xff] %v796
  %812 = vst [vmem:[#allocation2 + $0x28] sm:$0xff] %v799
  %813 = vst [vmem:[#allocation2 + $0x30] sm:$0xff] %v802
  %814 = vst [vmem:[#allocation2 + $0x38] sm:$0xff] %v805
  %v815 = vld [vmem:[#allocation2] sm:$0xff]
  %816 = vmatpush.msra.mxu0 0.0
  %817 = vmatpush.msra.mxu0 0.0
  %818 = vmatpush.msra.mxu0 0.0
  %819 = vmatpush.msra.mxu0 0.0
  %820 = vmatpush.msra.mxu0 0.0
  %821 = vmatpush.msra.mxu0 0.0
  %822 = vmatpush.msra.mxu0 0.0
  %823 = vmatpush.msra.mxu0 0.0
  %824 = vmatpush.msra.mxu0 0.0
  %825 = vmatpush.msra.mxu0 0.0
  %826 = vmatpush.msra.mxu0 0.0
  %827 = vmatpush.msra.mxu0 0.0
  %828 = vmatpush.msra.mxu0 %v729
  %829 = vmatpush.msra.mxu0 %v728
  %830 = vmatpush.msra.mxu0 %v727
  %831 = vmatpush.msra.mxu0 %v726
  %832 = vmatmul.f32.gmra.mxu0 %v132
  %v833 = vpop.f32.mrf.mxu0
  %v834 = vadd.f32 0.0, %v833
  %835 = vdwg.mxu0
  %v836 = vadd.f32 %v815, %v834
  %v837 = vxor.u32 %v836, 2147483648
  %v838 = vmul.f32 %v837, 1.442695
  %v839 = vpow.pop %v838
  %v840 = vadd.f32 %v839, 1.0
  %v841 = vrcp.pop %v840
  %v842 = vmul.f32 %v840, %v841
  %v843 = vsub.f32 1.0, %v842
  %v844 = vmul.f32 %v841, %v843
  %v845 = vadd.f32 %v841, %v844
  %vm846 = vweird.f32 %v840
  %vm847 = vweird.f32 %v841
  %vm848 = vmor %vm846, %vm847
  %v849 = vsel %vm848, %v841, %v845
  %v850 = vand.u32 2147483647, %v840
  %vm851 = vcmp.eq.f32.partialorder %v850, 8.507059e+37
  %v852 = vand.u32 %v840, 2147483648
  %v853 = vor.u32 1.1754944e-38, %v852
  %v854 = vsel %vm851, %v853, %v849
  %v855 = vmul.f32 1.0, %v854
  %v856 = vmul.f32 %v855, 0.0
  %v857 = vtanh.pop %v836
  %859 = vrot.lane.b32.xlu0 %v857, 64
  %v860 = vpop.permute.xlu0 %859
  %v862 = vmul.f32 %v855, %v860
  %864 = vrot.lane.b32.xlu0 %v862, 96
  %v865 = vpop.permute.xlu0 %864
  %v867 = vadd.f32 %v856, %v865
  %v868 = vtanh.pop %v867
  %870 = vrot.lane.b32.xlu0 %v868, 64
  %v871 = vpop.permute.xlu0 %870
  %v873 = vmul.f32 %v855, %v871
  %v874 = vsel %vm197, %v873, 0.0
  %v875 = vsel %vm197, %v867, 0.0
  %877 = vrot.lane.b32.xlu0 %v874, 64
  %v878 = vpop.permute.xlu0 %877
  %880 = vst.msk [vmem:[#allocation3] sm:$0xff] %vm56, %v878
  %v881 = vld [vmem:[#allocation2 + $0x8] sm:$0xff]
  %v882 = vsel %vm56, %v878, 0
  %884 = vmatpush.msra.mxu0 0.0
  %885 = vmatpush.msra.mxu0 0.0
  %886 = vmatpush.msra.mxu0 0.0
  %887 = vmatpush.msra.mxu0 0.0
  %888 = vmatpush.msra.mxu0 0.0
  %889 = vmatpush.msra.mxu0 0.0
  %890 = vmatpush.msra.mxu0 0.0
  %891 = vmatpush.msra.mxu0 0.0
  %892 = vmatpush.msra.mxu0 0.0
  %893 = vmatpush.msra.mxu0 0.0
  %894 = vmatpush.msra.mxu0 0.0
  %895 = vmatpush.msra.mxu0 0.0
  %896 = vmatpush.msra.mxu0 %v729
  %897 = vmatpush.msra.mxu0 %v728
  %898 = vmatpush.msra.mxu0 %v727
  %899 = vmatpush.msra.mxu0 %v726
  %900 = vmatmul.f32.gmra.mxu0 %v882
  %v901 = vpop.f32.mrf.mxu0
  %v902 = vadd.f32 0.0, %v901
  %903 = vdwg.mxu0
  %v904 = vadd.f32 %v881, %v902
  %v905 = vxor.u32 %v904, 2147483648
  %v906 = vmul.f32 %v905, 1.442695
  %v907 = vpow.pop %v906
  %v908 = vadd.f32 %v907, 1.0
  %v909 = vrcp.pop %v908
  %v910 = vmul.f32 %v908, %v909
  %v911 = vsub.f32 1.0, %v910
  %v912 = vmul.f32 %v909, %v911
  %v913 = vadd.f32 %v909, %v912
  %vm914 = vweird.f32 %v908
  %vm915 = vweird.f32 %v909
  %vm916 = vmor %vm914, %vm915
  %v917 = vsel %vm916, %v909, %v913
  %v918 = vand.u32 2147483647, %v908
  %vm919 = vcmp.eq.f32.partialorder %v918, 8.507059e+37
  %v920 = vand.u32 %v908, 2147483648
  %v921 = vor.u32 1.1754944e-38, %v920
  %v922 = vsel %vm919, %v921, %v917
  %v923 = vmul.f32 1.0, %v922
  %v924 = vmul.f32 %v923, %v875
  %v925 = vtanh.pop %v904
  %927 = vrot.lane.b32.xlu0 %v925, 64
  %v928 = vpop.permute.xlu0 %927
  %v930 = vmul.f32 %v923, %v928
  %932 = vrot.lane.b32.xlu0 %v930, 96
  %v933 = vpop.permute.xlu0 %932
  %v935 = vadd.f32 %v924, %v933
  %v936 = vtanh.pop %v935
  %938 = vrot.lane.b32.xlu0 %v936, 64
  %v939 = vpop.permute.xlu0 %938
  %v941 = vmul.f32 %v923, %v939
  %v942 = vsel %vm271, %v941, %v874
  %v943 = vsel %vm271, %v935, %v875
  %945 = vrot.lane.b32.xlu0 %v942, 64
  %v946 = vpop.permute.xlu0 %945
  %948 = vst.msk [vmem:[#allocation3 + $0x8] sm:$0xff] %vm56, %v946
  %v949 = vld [vmem:[#allocation2 + $0x10] sm:$0xff]
  %v950 = vsel %vm56, %v946, 0
  %952 = vmatpush.msra.mxu0 0.0
  %953 = vmatpush.msra.mxu0 0.0
  %954 = vmatpush.msra.mxu0 0.0
  %955 = vmatpush.msra.mxu0 0.0
  %956 = vmatpush.msra.mxu0 0.0
  %957 = vmatpush.msra.mxu0 0.0
  %958 = vmatpush.msra.mxu0 0.0
  %959 = vmatpush.msra.mxu0 0.0
  %960 = vmatpush.msra.mxu0 0.0
  %961 = vmatpush.msra.mxu0 0.0
  %962 = vmatpush.msra.mxu0 0.0
  %963 = vmatpush.msra.mxu0 0.0
  %964 = vmatpush.msra.mxu0 %v729
  %965 = vmatpush.msra.mxu0 %v728
  %966 = vmatpush.msra.mxu0 %v727
  %967 = vmatpush.msra.mxu0 %v726
  %968 = vmatmul.f32.gmra.mxu0 %v950
  %v969 = vpop.f32.mrf.mxu0
  %v970 = vadd.f32 0.0, %v969
  %971 = vdwg.mxu0
  %v972 = vadd.f32 %v949, %v970
  %v973 = vxor.u32 %v972, 2147483648
  %v974 = vmul.f32 %v973, 1.442695
  %v975 = vpow.pop %v974
  %v976 = vadd.f32 %v975, 1.0
  %v977 = vrcp.pop %v976
  %v978 = vmul.f32 %v976, %v977
  %v979 = vsub.f32 1.0, %v978
  %v980 = vmul.f32 %v977, %v979
  %v981 = vadd.f32 %v977, %v980
  %vm982 = vweird.f32 %v976
  %vm983 = vweird.f32 %v977
  %vm984 = vmor %vm982, %vm983
  %v985 = vsel %vm984, %v977, %v981
  %v986 = vand.u32 2147483647, %v976
  %vm987 = vcmp.eq.f32.partialorder %v986, 8.507059e+37
  %v988 = vand.u32 %v976, 2147483648
  %v989 = vor.u32 1.1754944e-38, %v988
  %v990 = vsel %vm987, %v989, %v985
  %v991 = vmul.f32 1.0, %v990
  %v992 = vmul.f32 %v991, %v943
  %v993 = vtanh.pop %v972
  %995 = vrot.lane.b32.xlu0 %v993, 64
  %v996 = vpop.permute.xlu0 %995
  %v998 = vmul.f32 %v991, %v996
  %1000 = vrot.lane.b32.xlu0 %v998, 96
  %v1001 = vpop.permute.xlu0 %1000
  %v1003 = vadd.f32 %v992, %v1001
  %v1004 = vtanh.pop %v1003
  %1006 = vrot.lane.b32.xlu0 %v1004, 64
  %v1007 = vpop.permute.xlu0 %1006
  %v1009 = vmul.f32 %v991, %v1007
  %v1010 = vsel %vm345, %v1009, %v942
  %v1011 = vsel %vm345, %v1003, %v943
  %1013 = vrot.lane.b32.xlu0 %v1010, 64
  %v1014 = vpop.permute.xlu0 %1013
  %1016 = vst.msk [vmem:[#allocation3 + $0x10] sm:$0xff] %vm56, %v1014
  %v1017 = vld [vmem:[#allocation2 + $0x18] sm:$0xff]
  %v1018 = vsel %vm56, %v1014, 0
  %1020 = vmatpush.msra.mxu0 0.0
  %1021 = vmatpush.msra.mxu0 0.0
  %1022 = vmatpush.msra.mxu0 0.0
  %1023 = vmatpush.msra.mxu0 0.0
  %1024 = vmatpush.msra.mxu0 0.0
  %1025 = vmatpush.msra.mxu0 0.0
  %1026 = vmatpush.msra.mxu0 0.0
  %1027 = vmatpush.msra.mxu0 0.0
  %1028 = vmatpush.msra.mxu0 0.0
  %1029 = vmatpush.msra.mxu0 0.0
  %1030 = vmatpush.msra.mxu0 0.0
  %1031 = vmatpush.msra.mxu0 0.0
  %1032 = vmatpush.msra.mxu0 %v729
  %1033 = vmatpush.msra.mxu0 %v728
  %1034 = vmatpush.msra.mxu0 %v727
  %1035 = vmatpush.msra.mxu0 %v726
  %1036 = vmatmul.f32.gmra.mxu0 %v1018
  %v1037 = vpop.f32.mrf.mxu0
  %v1038 = vadd.f32 0.0, %v1037
  %1039 = vdwg.mxu0
  %v1040 = vadd.f32 %v1017, %v1038
  %v1041 = vxor.u32 %v1040, 2147483648
  %v1042 = vmul.f32 %v1041, 1.442695
  %v1043 = vpow.pop %v1042
  %v1044 = vadd.f32 %v1043, 1.0
  %v1045 = vrcp.pop %v1044
  %v1046 = vmul.f32 %v1044, %v1045
  %v1047 = vsub.f32 1.0, %v1046
  %v1048 = vmul.f32 %v1045, %v1047
  %v1049 = vadd.f32 %v1045, %v1048
  %vm1050 = vweird.f32 %v1044
  %vm1051 = vweird.f32 %v1045
  %vm1052 = vmor %vm1050, %vm1051
  %v1053 = vsel %vm1052, %v1045, %v1049
  %v1054 = vand.u32 2147483647, %v1044
  %vm1055 = vcmp.eq.f32.partialorder %v1054, 8.507059e+37
  %v1056 = vand.u32 %v1044, 2147483648
  %v1057 = vor.u32 1.1754944e-38, %v1056
  %v1058 = vsel %vm1055, %v1057, %v1053
  %v1059 = vmul.f32 1.0, %v1058
  %v1060 = vmul.f32 %v1059, %v1011
  %v1061 = vtanh.pop %v1040
  %1063 = vrot.lane.b32.xlu0 %v1061, 64
  %v1064 = vpop.permute.xlu0 %1063
  %v1066 = vmul.f32 %v1059, %v1064
  %1068 = vrot.lane.b32.xlu0 %v1066, 96
  %v1069 = vpop.permute.xlu0 %1068
  %v1071 = vadd.f32 %v1060, %v1069
  %v1072 = vtanh.pop %v1071
  %1074 = vrot.lane.b32.xlu0 %v1072, 64
  %v1075 = vpop.permute.xlu0 %1074
  %v1077 = vmul.f32 %v1059, %v1075
  %v1078 = vsel %vm419, %v1077, %v1010
  %v1079 = vsel %vm419, %v1071, %v1011
  %1081 = vrot.lane.b32.xlu0 %v1078, 64
  %v1082 = vpop.permute.xlu0 %1081
  %1084 = vst.msk [vmem:[#allocation3 + $0x18] sm:$0xff] %vm56, %v1082
  %v1085 = vld [vmem:[#allocation2 + $0x20] sm:$0xff]
  %v1086 = vsel %vm56, %v1082, 0
  %1088 = vmatpush.msra.mxu0 0.0
  %1089 = vmatpush.msra.mxu0 0.0
  %1090 = vmatpush.msra.mxu0 0.0
  %1091 = vmatpush.msra.mxu0 0.0
  %1092 = vmatpush.msra.mxu0 0.0
  %1093 = vmatpush.msra.mxu0 0.0
  %1094 = vmatpush.msra.mxu0 0.0
  %1095 = vmatpush.msra.mxu0 0.0
  %1096 = vmatpush.msra.mxu0 0.0
  %1097 = vmatpush.msra.mxu0 0.0
  %1098 = vmatpush.msra.mxu0 0.0
  %1099 = vmatpush.msra.mxu0 0.0
  %1100 = vmatpush.msra.mxu0 %v729
  %1101 = vmatpush.msra.mxu0 %v728
  %1102 = vmatpush.msra.mxu0 %v727
  %1103 = vmatpush.msra.mxu0 %v726
  %1104 = vmatmul.f32.gmra.mxu0 %v1086
  %v1105 = vpop.f32.mrf.mxu0
  %v1106 = vadd.f32 0.0, %v1105
  %1107 = vdwg.mxu0
  %v1108 = vadd.f32 %v1085, %v1106
  %v1109 = vxor.u32 %v1108, 2147483648
  %v1110 = vmul.f32 %v1109, 1.442695
  %v1111 = vpow.pop %v1110
  %v1112 = vadd.f32 %v1111, 1.0
  %v1113 = vrcp.pop %v1112
  %v1114 = vmul.f32 %v1112, %v1113
  %v1115 = vsub.f32 1.0, %v1114
  %v1116 = vmul.f32 %v1113, %v1115
  %v1117 = vadd.f32 %v1113, %v1116
  %vm1118 = vweird.f32 %v1112
  %vm1119 = vweird.f32 %v1113
  %vm1120 = vmor %vm1118, %vm1119
  %v1121 = vsel %vm1120, %v1113, %v1117
  %v1122 = vand.u32 2147483647, %v1112
  %vm1123 = vcmp.eq.f32.partialorder %v1122, 8.507059e+37
  %v1124 = vand.u32 %v1112, 2147483648
  %v1125 = vor.u32 1.1754944e-38, %v1124
  %v1126 = vsel %vm1123, %v1125, %v1121
  %v1127 = vmul.f32 1.0, %v1126
  %v1128 = vmul.f32 %v1127, %v1079
  %v1129 = vtanh.pop %v1108
  %1131 = vrot.lane.b32.xlu0 %v1129, 64
  %v1132 = vpop.permute.xlu0 %1131
  %v1134 = vmul.f32 %v1127, %v1132
  %1136 = vrot.lane.b32.xlu0 %v1134, 96
  %v1137 = vpop.permute.xlu0 %1136
  %v1139 = vadd.f32 %v1128, %v1137
  %v1140 = vtanh.pop %v1139
  %1142 = vrot.lane.b32.xlu0 %v1140, 64
  %v1143 = vpop.permute.xlu0 %1142
  %v1145 = vmul.f32 %v1127, %v1143
  %v1146 = vsel %vm493, %v1145, %v1078
  %v1147 = vsel %vm493, %v1139, %v1079
  %1149 = vrot.lane.b32.xlu0 %v1146, 64
  %v1150 = vpop.permute.xlu0 %1149
  %1152 = vst.msk [vmem:[#allocation3 + $0x20] sm:$0xff] %vm56, %v1150
  %v1153 = vld [vmem:[#allocation2 + $0x28] sm:$0xff]
  %v1154 = vsel %vm56, %v1150, 0
  %1156 = vmatpush.msra.mxu0 0.0
  %1157 = vmatpush.msra.mxu0 0.0
  %1158 = vmatpush.msra.mxu0 0.0
  %1159 = vmatpush.msra.mxu0 0.0
  %1160 = vmatpush.msra.mxu0 0.0
  %1161 = vmatpush.msra.mxu0 0.0
  %1162 = vmatpush.msra.mxu0 0.0
  %1163 = vmatpush.msra.mxu0 0.0
  %1164 = vmatpush.msra.mxu0 0.0
  %1165 = vmatpush.msra.mxu0 0.0
  %1166 = vmatpush.msra.mxu0 0.0
  %1167 = vmatpush.msra.mxu0 0.0
  %1168 = vmatpush.msra.mxu0 %v729
  %1169 = vmatpush.msra.mxu0 %v728
  %1170 = vmatpush.msra.mxu0 %v727
  %1171 = vmatpush.msra.mxu0 %v726
  %1172 = vmatmul.f32.gmra.mxu0 %v1154
  %v1173 = vpop.f32.mrf.mxu0
  %v1174 = vadd.f32 0.0, %v1173
  %1175 = vdwg.mxu0
  %v1176 = vadd.f32 %v1153, %v1174
  %v1177 = vxor.u32 %v1176, 2147483648
  %v1178 = vmul.f32 %v1177, 1.442695
  %v1179 = vpow.pop %v1178
  %v1180 = vadd.f32 %v1179, 1.0
  %v1181 = vrcp.pop %v1180
  %v1182 = vmul.f32 %v1180, %v1181
  %v1183 = vsub.f32 1.0, %v1182
  %v1184 = vmul.f32 %v1181, %v1183
  %v1185 = vadd.f32 %v1181, %v1184
  %vm1186 = vweird.f32 %v1180
  %vm1187 = vweird.f32 %v1181
  %vm1188 = vmor %vm1186, %vm1187
  %v1189 = vsel %vm1188, %v1181, %v1185
  %v1190 = vand.u32 2147483647, %v1180
  %vm1191 = vcmp.eq.f32.partialorder %v1190, 8.507059e+37
  %v1192 = vand.u32 %v1180, 2147483648
  %v1193 = vor.u32 1.1754944e-38, %v1192
  %v1194 = vsel %vm1191, %v1193, %v1189
  %v1195 = vmul.f32 1.0, %v1194
  %v1196 = vmul.f32 %v1195, %v1147
  %v1197 = vtanh.pop %v1176
  %1199 = vrot.lane.b32.xlu0 %v1197, 64
  %v1200 = vpop.permute.xlu0 %1199
  %v1202 = vmul.f32 %v1195, %v1200
  %1204 = vrot.lane.b32.xlu0 %v1202, 96
  %v1205 = vpop.permute.xlu0 %1204
  %v1207 = vadd.f32 %v1196, %v1205
  %v1208 = vtanh.pop %v1207
  %1210 = vrot.lane.b32.xlu0 %v1208, 64
  %v1211 = vpop.permute.xlu0 %1210
  %v1213 = vmul.f32 %v1195, %v1211
  %v1214 = vsel %vm567, %v1213, %v1146
  %v1215 = vsel %vm567, %v1207, %v1147
  %1217 = vrot.lane.b32.xlu0 %v1214, 64
  %v1218 = vpop.permute.xlu0 %1217
  %1220 = vst.msk [vmem:[#allocation3 + $0x28] sm:$0xff] %vm56, %v1218
  %v1221 = vld [vmem:[#allocation2 + $0x30] sm:$0xff]
  %v1222 = vsel %vm56, %v1218, 0
  %1224 = vmatpush.msra.mxu0 0.0
  %1225 = vmatpush.msra.mxu0 0.0
  %1226 = vmatpush.msra.mxu0 0.0
  %1227 = vmatpush.msra.mxu0 0.0
  %1228 = vmatpush.msra.mxu0 0.0
  %1229 = vmatpush.msra.mxu0 0.0
  %1230 = vmatpush.msra.mxu0 0.0
  %1231 = vmatpush.msra.mxu0 0.0
  %1232 = vmatpush.msra.mxu0 0.0
  %1233 = vmatpush.msra.mxu0 0.0
  %1234 = vmatpush.msra.mxu0 0.0
  %1235 = vmatpush.msra.mxu0 0.0
  %1236 = vmatpush.msra.mxu0 %v729
  %1237 = vmatpush.msra.mxu0 %v728
  %1238 = vmatpush.msra.mxu0 %v727
  %1239 = vmatpush.msra.mxu0 %v726
  %1240 = vmatmul.f32.gmra.mxu0 %v1222
  %v1241 = vpop.f32.mrf.mxu0
  %v1242 = vadd.f32 0.0, %v1241
  %1243 = vdwg.mxu0
  %v1244 = vadd.f32 %v1221, %v1242
  %v1245 = vxor.u32 %v1244, 2147483648
  %v1246 = vmul.f32 %v1245, 1.442695
  %v1247 = vpow.pop %v1246
  %v1248 = vadd.f32 %v1247, 1.0
  %v1249 = vrcp.pop %v1248
  %v1250 = vmul.f32 %v1248, %v1249
  %v1251 = vsub.f32 1.0, %v1250
  %v1252 = vmul.f32 %v1249, %v1251
  %v1253 = vadd.f32 %v1249, %v1252
  %vm1254 = vweird.f32 %v1248
  %vm1255 = vweird.f32 %v1249
  %vm1256 = vmor %vm1254, %vm1255
  %v1257 = vsel %vm1256, %v1249, %v1253
  %v1258 = vand.u32 2147483647, %v1248
  %vm1259 = vcmp.eq.f32.partialorder %v1258, 8.507059e+37
  %v1260 = vand.u32 %v1248, 2147483648
  %v1261 = vor.u32 1.1754944e-38, %v1260
  %v1262 = vsel %vm1259, %v1261, %v1257
  %v1263 = vmul.f32 1.0, %v1262
  %v1264 = vmul.f32 %v1263, %v1215
  %v1265 = vtanh.pop %v1244
  %1267 = vrot.lane.b32.xlu0 %v1265, 64
  %v1268 = vpop.permute.xlu0 %1267
  %v1270 = vmul.f32 %v1263, %v1268
  %1272 = vrot.lane.b32.xlu0 %v1270, 96
  %v1273 = vpop.permute.xlu0 %1272
  %v1275 = vadd.f32 %v1264, %v1273
  %v1276 = vtanh.pop %v1275
  %1278 = vrot.lane.b32.xlu0 %v1276, 64
  %v1279 = vpop.permute.xlu0 %1278
  %v1281 = vmul.f32 %v1263, %v1279
  %v1282 = vsel %vm641, %v1281, %v1214
  %v1283 = vsel %vm641, %v1275, %v1215
  %1285 = vrot.lane.b32.xlu0 %v1282, 64
  %v1286 = vpop.permute.xlu0 %1285
  %1288 = vst.msk [vmem:[#allocation3 + $0x30] sm:$0xff] %vm56, %v1286
  %v1289 = vld [vmem:[#allocation2 + $0x38] sm:$0xff]
  %v1290 = vsel %vm56, %v1286, 0
  %1292 = vmatpush.msra.mxu0 0.0
  %1293 = vmatpush.msra.mxu0 0.0
  %1294 = vmatpush.msra.mxu0 0.0
  %1295 = vmatpush.msra.mxu0 0.0
  %1296 = vmatpush.msra.mxu0 0.0
  %1297 = vmatpush.msra.mxu0 0.0
  %1298 = vmatpush.msra.mxu0 0.0
  %1299 = vmatpush.msra.mxu0 0.0
  %1300 = vmatpush.msra.mxu0 0.0
  %1301 = vmatpush.msra.mxu0 0.0
  %1302 = vmatpush.msra.mxu0 0.0
  %1303 = vmatpush.msra.mxu0 0.0
  %1304 = vmatpush.msra.mxu0 %v729
  %1305 = vmatpush.msra.mxu0 %v728
  %1306 = vmatpush.msra.mxu0 %v727
  %1307 = vmatpush.msra.mxu0 %v726
  %1308 = vmatmul.f32.gmra.mxu0 %v1290
  %v1309 = vpop.f32.mrf.mxu0
  %v1310 = vadd.f32 0.0, %v1309
  %1311 = vdwg.mxu0
  %v1312 = vadd.f32 %v1289, %v1310
  %v1313 = vxor.u32 %v1312, 2147483648
  %v1314 = vmul.f32 %v1313, 1.442695
  %v1315 = vpow.pop %v1314
  %v1316 = vadd.f32 %v1315, 1.0
  %v1317 = vrcp.pop %v1316
  %v1318 = vmul.f32 %v1316, %v1317
  %v1319 = vsub.f32 1.0, %v1318
  %v1320 = vmul.f32 %v1317, %v1319
  %v1321 = vadd.f32 %v1317, %v1320
  %vm1322 = vweird.f32 %v1316
  %vm1323 = vweird.f32 %v1317
  %vm1324 = vmor %vm1322, %vm1323
  %v1325 = vsel %vm1324, %v1317, %v1321
  %v1326 = vand.u32 2147483647, %v1316
  %vm1327 = vcmp.eq.f32.partialorder %v1326, 8.507059e+37
  %v1328 = vand.u32 %v1316, 2147483648
  %v1329 = vor.u32 1.1754944e-38, %v1328
  %v1330 = vsel %vm1327, %v1329, %v1325
  %v1331 = vmul.f32 1.0, %v1330
  %v1332 = vmul.f32 %v1331, %v1283
  %v1333 = vtanh.pop %v1312
  %1335 = vrot.lane.b32.xlu0 %v1333, 64
  %v1336 = vpop.permute.xlu0 %1335
  %v1338 = vmul.f32 %v1331, %v1336
  %1340 = vrot.lane.b32.xlu0 %v1338, 96
  %v1341 = vpop.permute.xlu0 %1340
  %v1343 = vadd.f32 %v1332, %v1341
  %v1344 = vtanh.pop %v1343
  %1346 = vrot.lane.b32.xlu0 %v1344, 64
  %v1347 = vpop.permute.xlu0 %1346
  %v1349 = vmul.f32 %v1331, %v1347
  %v1350 = vsel %vm715, %v1349, %v1282
  %1352 = vrot.lane.b32.xlu0 %v1350, 64
  %v1353 = vpop.permute.xlu0 %1352
  %1355 = vst.msk [vmem:[#allocation3 + $0x38] sm:$0xff] %vm56, %v1353
  %v1356 = vld [vmem:[#allocation3] sm:$0xff]
  %v1357 = vld [vmem:[#allocation3 + $0x8] sm:$0xff]
  %v1358 = vld [vmem:[#allocation3 + $0x10] sm:$0xff]
  %v1359 = vld [vmem:[#allocation3 + $0x18] sm:$0xff]
  %v1360 = vld [vmem:[#allocation3 + $0x20] sm:$0xff]
  %v1361 = vld [vmem:[#allocation3 + $0x28] sm:$0xff]
  %v1362 = vld [vmem:[#allocation3 + $0x30] sm:$0xff]
  %v1363 = vld [vmem:[#allocation3 + $0x38] sm:$0xff]
  %v1364 = vld [vmem:[%s8] sm:$0xff]
  %v1365 = vld [vmem:[%s8 + $0x8] sm:$0xff]
  %v1366 = vld [vmem:[%s8 + $0x10] sm:$0xff]
  %v1367 = vld [vmem:[%s8 + $0x18] sm:$0xff]
  %v1368 = vld [vmem:[%s9] sm:$0x1]
  %v1370 = vperm.slane %v1368, 0
  %v1373 = vsel %vm56, %v1356, 0
  %v1376 = vsel %vm56, %v1357, 0
  %v1379 = vsel %vm56, %v1358, 0
  %v1382 = vsel %vm56, %v1359, 0
  %v1385 = vsel %vm56, %v1360, 0
  %v1388 = vsel %vm56, %v1361, 0
  %v1391 = vsel %vm56, %v1362, 0
  %v1394 = vsel %vm56, %v1363, 0
  %1396 = vmatpush.msra.mxu0 0.0
  %1397 = vmatpush.msra.mxu0 0.0
  %1398 = vmatpush.msra.mxu0 0.0
  %1399 = vmatpush.msra.mxu0 0.0
  %1400 = vmatpush.msra.mxu0 0.0
  %1401 = vmatpush.msra.mxu0 0.0
  %1402 = vmatpush.msra.mxu0 0.0
  %1403 = vmatpush.msra.mxu0 0.0
  %1404 = vmatpush.msra.mxu0 0.0
  %1405 = vmatpush.msra.mxu0 0.0
  %1406 = vmatpush.msra.mxu0 0.0
  %1407 = vmatpush.msra.mxu0 0.0
  %1408 = vmatpush.msra.mxu0 %v1367
  %1409 = vmatpush.msra.mxu0 %v1366
  %1410 = vmatpush.msra.mxu0 %v1365
  %1411 = vmatpush.msra.mxu0 %v1364
  %1412 = vmatmul.f32.gmra.mxu0 %v1373
  %v1413 = vpop.f32.mrf.mxu0
  %v1414 = vadd.f32 %v1370, %v1413
  %1415 = vmatmul.f32.gmra.mxu0 %v1376
  %v1416 = vpop.f32.mrf.mxu0
  %v1417 = vadd.f32 %v1370, %v1416
  %1418 = vmatmul.f32.gmra.mxu0 %v1379
  %v1419 = vpop.f32.mrf.mxu0
  %v1420 = vadd.f32 %v1370, %v1419
  %1421 = vmatmul.f32.gmra.mxu0 %v1382
  %v1422 = vpop.f32.mrf.mxu0
  %v1423 = vadd.f32 %v1370, %v1422
  %1424 = vmatmul.f32.gmra.mxu0 %v1385
  %v1425 = vpop.f32.mrf.mxu0
  %v1426 = vadd.f32 %v1370, %v1425
  %1427 = vmatmul.f32.gmra.mxu0 %v1388
  %v1428 = vpop.f32.mrf.mxu0
  %v1429 = vadd.f32 %v1370, %v1428
  %1430 = vmatmul.f32.gmra.mxu0 %v1391
  %v1431 = vpop.f32.mrf.mxu0
  %v1432 = vadd.f32 %v1370, %v1431
  %1433 = vmatmul.f32.gmra.mxu0 %v1394
  %v1434 = vpop.f32.mrf.mxu0
  %v1435 = vadd.f32 %v1370, %v1434
  %1436 = vdwg.mxu0
  %1437 = vst [vmem:[%s10] sm:$0xff] %v1414
  %1438 = vst [vmem:[%s10 + $0x8] sm:$0xff] %v1417
  %1439 = vst [vmem:[%s10 + $0x10] sm:$0xff] %v1420
  %1440 = vst [vmem:[%s10 + $0x18] sm:$0xff] %v1423
  %1441 = vst [vmem:[%s10 + $0x20] sm:$0xff] %v1426
  %1442 = vst [vmem:[%s10 + $0x28] sm:$0xff] %v1429
  %1443 = vst [vmem:[%s10 + $0x30] sm:$0xff] %v1432
  %1444 = vst [vmem:[%s10 + $0x38] sm:$0xff] %v1435
  // Predicated region
  $region42: #{proposal_model_forward.1} parent=0 // pred_check
    _
  $region43: #{proposal_model_forward.1} parent=0 // pred_check_branch
    %1446 = sbr.rel (0) target = $region45
  $region44: #{proposal_model_forward.1} parent=0 // pred_region
    _
  $region45: #{proposal_model_forward.1} parent=0 // pred_fallthru
    _
  // Predicated region
  $region46: #{proposal_model_forward.1} parent=0 // pred_check
    _
  $region47: #{proposal_model_forward.1} parent=0 // pred_check_branch
    %1448 = sbr.rel (0) target = $region49
  $region48: #{proposal_model_forward.1} parent=0 // pred_region
    _
  $region49: #{proposal_model_forward.1} parent=0 // pred_fallthru
    _

</llo_original>
